<compile_context>
chip_gen: v5e
topology: v5e:2x2
jax: 0.10.0
libtpu: 0.0.40
codegen_flags: <defaults>
</compile_context>

<pallas_src>
import jax
import jax.numpy as jnp
from jax.experimental import pallas as pl
from jax.experimental.pallas import tpu as pltpu

EPS = 1e-5


def _layernorm_relu(h, gamma, beta):
    # One-pass statistics: E[h^2] - mu^2 lets the two lane reductions issue
    # back-to-back on the XLU and removes one full-width subtract.
    mu = jnp.mean(h, axis=-1, keepdims=True)
    e2 = jnp.mean(h * h, axis=-1, keepdims=True)
    var = jnp.maximum(e2 - mu * mu, 0.0)
    h = (h - mu) * jax.lax.rsqrt(var + EPS) * gamma + beta
    return jnp.maximum(h, 0.0)


def bar_decoder_kernel(
    x_ref,
    w1_ref, b1_ref, g1_ref, be1_ref,
    w2_ref, b2_ref, g2_ref, be2_ref,
    w3_ref, b3_ref,
    o_ref,
):
    x = x_ref[...]

    # Linear 1 + LayerNorm + ReLU (MXU accumulates in f32; LN stats in f32).
    h = jnp.dot(x, w1_ref[...], preferred_element_type=jnp.float32)
    h = h + b1_ref[...].astype(jnp.float32)
    h = _layernorm_relu(h, g1_ref[...].astype(jnp.float32),
                        be1_ref[...].astype(jnp.float32))

    # Linear 2 + LayerNorm + ReLU.
    h = jnp.dot(h.astype(w2_ref.dtype), w2_ref[...],
                preferred_element_type=jnp.float32)
    h = h + b2_ref[...].astype(jnp.float32)
    h = _layernorm_relu(h, g2_ref[...].astype(jnp.float32),
                        be2_ref[...].astype(jnp.float32))

    # Linear 3 (output projection; columns padded to a multiple of 128 so the
    # final store is an unmasked, lane-dense vst).
    out = jnp.dot(h.astype(w3_ref.dtype), w3_ref[...],
                  preferred_element_type=jnp.float32)
    out = out + b3_ref[...].astype(jnp.float32)
    o_ref[...] = out.astype(o_ref.dtype)


def _round_up(n, m):
    return ((n + m - 1) // m) * m


def _pick_tb(B, latent_dim, hidden_dim, out_pad, itemsize):
    # Prefer a big tile (amortizes per-step overhead, fills MXU rows) while
    # keeping >= 2 grid steps when B allows (both v7x TensorCores get work)
    # and keeping the per-step VMEM working set comfortably under the default
    # scoped-VMEM budget.
    weight_bytes = (latent_dim * hidden_dim + hidden_dim * hidden_dim
                    + hidden_dim * out_pad + 5 * hidden_dim + out_pad) * itemsize
    budget = 24 << 20  # leave headroom under the ~32 MiB default scoped VMEM
    for cand in (1024, 512, 256, 128, 64, 32, 16, 8):
        if cand < B and B % cand == 0:
            # x/out tiles are double-buffered; hidden activations live in vregs
            # or compiler-managed VMEM (~3 f32 copies worst case).
            tile_bytes = 2 * cand * (latent_dim + out_pad) * itemsize \
                         + 3 * cand * hidden_dim * 4
            if weight_bytes + tile_bytes <= budget:
                return cand
    return B  # tiny / odd batches: single full-block tile


def bar_decoder(x, params, *, tb=None):
    """x: [B, latent_dim] -> [B, output_dim]."""
    (w1, b1, g1, be1, w2, b2, g2, be2, w3, b3) = params
    B, latent_dim = x.shape
    hidden_dim = w1.shape[1]
    output_dim = w3.shape[1]

    # Lane-dense output: pad the output projection up to a multiple of 128.
    out_pad = max(128, _round_up(output_dim, 128))
    if out_pad != output_dim:
        w3p = jnp.pad(w3, ((0, 0), (0, out_pad - output_dim)))
        b3p = jnp.pad(b3, ((0, 0), (0, out_pad - output_dim)))
    else:
        w3p, b3p = w3, b3

    if tb is None:
        tb = _pick_tb(B, latent_dim, hidden_dim, out_pad, x.dtype.itemsize)
    assert B % tb == 0, "batch must be divisible by the batch tile"

    full = lambda shape: pl.BlockSpec(shape, lambda i: (0, 0))

    flops = 2 * B * (latent_dim * hidden_dim
                     + hidden_dim * hidden_dim
                     + hidden_dim * out_pad)
    bytes_accessed = (
        x.size * x.dtype.itemsize
        + sum(int(p.size) * p.dtype.itemsize
              for p in (w1, b1, g1, be1, w2, b2, g2, be2, w3p, b3p))
        + B * out_pad * x.dtype.itemsize)

    out = pl.pallas_call(
        bar_decoder_kernel,
        out_shape=jax.ShapeDtypeStruct((B, out_pad), x.dtype),
        grid_spec=pltpu.PrefetchScalarGridSpec(
            num_scalar_prefetch=0,
            grid=(B // tb,),
            in_specs=[
                pl.BlockSpec((tb, latent_dim), lambda i: (i, 0)),   # x tile
                full((latent_dim, hidden_dim)),                     # w1
                full((1, hidden_dim)),                              # b1
                full((1, hidden_dim)),                              # gamma1
                full((1, hidden_dim)),                              # beta1
                full((hidden_dim, hidden_dim)),                     # w2
                full((1, hidden_dim)),                              # b2
                full((1, hidden_dim)),                              # gamma2
                full((1, hidden_dim)),                              # beta2
                full((hidden_dim, out_pad)),                        # w3 (padded)
                full((1, out_pad)),                                 # b3 (padded)
            ],
            out_specs=pl.BlockSpec((tb, out_pad), lambda i: (i, 0)),
        ),
        compiler_params=pltpu.CompilerParams(
            dimension_semantics=("parallel",),
        ),
        cost_estimate=pl.CostEstimate(
            flops=flops, transcendentals=2 * B, bytes_accessed=bytes_accessed),
    )(x, w1, b1, g1, be1, w2, b2, g2, be2, w3p, b3p)

    return out[:, :output_dim]


def init_params(key, latent_dim, hidden_dim, output_dim, dtype=jnp.float32):
    # dtype=jnp.bfloat16 is supported on v6e/v7x (MXU-native rate); LayerNorm
    # statistics and accumulation remain f32 inside the kernel.
    ks = jax.random.split(key, 3)

    def lin(k, fan_in, fan_out):
        bound = 1.0 / (fan_in ** 0.5)
        kw, kb = jax.random.split(k)
        w = jax.random.uniform(kw, (fan_in, fan_out), dtype, -bound, bound)
        b = jax.random.uniform(kb, (1, fan_out), dtype, -bound, bound)
        return w, b

    w1, b1 = lin(ks[0], latent_dim, hidden_dim)
    w2, b2 = lin(ks[1], hidden_dim, hidden_dim)
    w3, b3 = lin(ks[2], hidden_dim, output_dim)
    # LayerNorm affine params: gamma=1, beta=0 (PyTorch default init).
    g1 = jnp.ones((1, hidden_dim), dtype)
    be1 = jnp.zeros((1, hidden_dim), dtype)
    g2 = jnp.ones((1, hidden_dim), dtype)
    be2 = jnp.zeros((1, hidden_dim), dtype)
    return (w1, b1, g1, be1, w2, b2, g2, be2, w3, b3)


def reference(x, params):
    (w1, b1, g1, be1, w2, b2, g2, be2, w3, b3) = params

    def ln(h, g, b):
        mu = jnp.mean(h, axis=-1, keepdims=True)
        var = jnp.mean((h - mu) ** 2, axis=-1, keepdims=True)
        return (h - mu) * jax.lax.rsqrt(var + EPS) * g + b

    h = jnp.maximum(ln(x @ w1 + b1, g1, be1), 0.0)
    h = jnp.maximum(ln(h @ w2 + b2, g2, be2), 0.0)
    return h @ w3 + b3


if __name__ == "__main__":
    latent_dim, hidden_dim, output_dim = 16, 32, 24
    batch = 256  # big enough to exercise the batch tiling (grid of 2)

    key = jax.random.PRNGKey(0)
    kx, kp = jax.random.split(key)
    x = jax.random.normal(kx, (batch, latent_dim), jnp.float32)
    params = init_params(kp, latent_dim, hidden_dim, output_dim)

    out = bar_decoder(x, params)          # default tb -> 128 (grid of 2)
    out = jax.block_until_ready(out)

    ref = reference(x, params)
    assert out.shape == (batch, output_dim)
    assert jnp.allclose(out, ref, atol=1e-4, rtol=1e-4), "mismatch vs pure-JAX reference"

    # Also sanity-check a tiny, non-tile-aligned batch (single full-block tile).
    x_small = jax.random.normal(kx, (4, latent_dim), jnp.float32)
    out_small = jax.block_until_ready(bar_decoder(x_small, params))
    assert jnp.allclose(out_small, reference(x_small, params), atol=1e-4, rtol=1e-4)

    print("KERNEL_OK")
</pallas_src>

<mosaic_0001>
module attributes {stable_mosaic.version = 11 : i64} {
  func.func @bar_decoder_kernel(%arg0: i32, %arg1: memref<128x16xf32, #tpu.memory_space<vmem>>, %arg2: memref<16x32xf32, #tpu.memory_space<vmem>>, %arg3: memref<1x32xf32, #tpu.memory_space<vmem>>, %arg4: memref<1x32xf32, #tpu.memory_space<vmem>>, %arg5: memref<1x32xf32, #tpu.memory_space<vmem>>, %arg6: memref<32x32xf32, #tpu.memory_space<vmem>>, %arg7: memref<1x32xf32, #tpu.memory_space<vmem>>, %arg8: memref<1x32xf32, #tpu.memory_space<vmem>>, %arg9: memref<1x32xf32, #tpu.memory_space<vmem>>, %arg10: memref<32x128xf32, #tpu.memory_space<vmem>>, %arg11: memref<1x128xf32, #tpu.memory_space<vmem>>, %arg12: memref<128x128xf32, #tpu.memory_space<vmem>>) attributes {dimension_semantics = [#tpu.dimension_semantics<parallel>], iteration_bounds = array<i64: 2>, scalar_prefetch = 0 : i64, scratch_operands = 0 : i64, tpu.core_type = #tpu.core_type<tc>, window_params = [{transform_indices = @transform_0, window_bounds = array<i64: 128, 16>}, {pipeline_mode = #tpu.pipeline_mode<synchronous>, transform_indices = @transform_1, window_bounds = array<i64: 16, 32>}, {pipeline_mode = #tpu.pipeline_mode<synchronous>, transform_indices = @transform_2, window_bounds = array<i64: 1, 32>}, {pipeline_mode = #tpu.pipeline_mode<synchronous>, transform_indices = @transform_3, window_bounds = array<i64: 1, 32>}, {pipeline_mode = #tpu.pipeline_mode<synchronous>, transform_indices = @transform_4, window_bounds = array<i64: 1, 32>}, {pipeline_mode = #tpu.pipeline_mode<synchronous>, transform_indices = @transform_5, window_bounds = array<i64: 32, 32>}, {pipeline_mode = #tpu.pipeline_mode<synchronous>, transform_indices = @transform_6, window_bounds = array<i64: 1, 32>}, {pipeline_mode = #tpu.pipeline_mode<synchronous>, transform_indices = @transform_7, window_bounds = array<i64: 1, 32>}, {pipeline_mode = #tpu.pipeline_mode<synchronous>, transform_indices = @transform_8, window_bounds = array<i64: 1, 32>}, {pipeline_mode = #tpu.pipeline_mode<synchronous>, transform_indices = @transform_9, window_bounds = array<i64: 32, 128>}, {pipeline_mode = #tpu.pipeline_mode<synchronous>, transform_indices = @transform_10, window_bounds = array<i64: 1, 128>}, {transform_indices = @transform_11, window_bounds = array<i64: 128, 128>}]} {
    %c0 = arith.constant 0 : index
    %c0_0 = arith.constant 0 : index
    %0 = vector.load %arg1[%c0, %c0_0] : memref<128x16xf32, #tpu.memory_space<vmem>>, vector<128x16xf32>
    %c0_1 = arith.constant 0 : index
    %c0_2 = arith.constant 0 : index
    %1 = vector.load %arg2[%c0_1, %c0_2] : memref<16x32xf32, #tpu.memory_space<vmem>>, vector<16x32xf32>
    %cst = arith.constant dense<0.000000e+00> : vector<128x32xf32>
    %2 = tpu.matmul %0, %1, %cst {dimension_numbers = #tpu.dot_dimension_numbers<[1], [0], [0], [1], [0, 0, 1, 1], [], []>} : vector<128x16xf32>, vector<16x32xf32>, vector<128x32xf32> -> vector<128x32xf32>
    %c0_3 = arith.constant 0 : index
    %c0_4 = arith.constant 0 : index
    %3 = vector.load %arg3[%c0_3, %c0_4] : memref<1x32xf32, #tpu.memory_space<vmem>>, vector<1x32xf32>
    %4 = vector.broadcast %3 : vector<1x32xf32> to vector<128x32xf32>
    %5 = arith.addf %2, %4 : vector<128x32xf32>
    %c0_5 = arith.constant 0 : index
    %c0_6 = arith.constant 0 : index
    %6 = vector.load %arg4[%c0_5, %c0_6] : memref<1x32xf32, #tpu.memory_space<vmem>>, vector<1x32xf32>
    %c0_7 = arith.constant 0 : index
    %c0_8 = arith.constant 0 : index
    %7 = vector.load %arg5[%c0_7, %c0_8] : memref<1x32xf32, #tpu.memory_space<vmem>>, vector<1x32xf32>
    %cst_9 = arith.constant dense<0.000000e+00> : vector<128xf32>
    %8 = vector.multi_reduction <add>, %5, %cst_9 [1] : vector<128x32xf32> to vector<128xf32>
    %9 = vector.shape_cast %8 : vector<128xf32> to vector<128x1xf32>
    %cst_10 = arith.constant 3.200000e+01 : f32
    %10 = vector.broadcast %cst_10 : f32 to vector<128x1xf32>
    %11 = arith.divf %9, %10 : vector<128x1xf32>
    %12 = arith.mulf %5, %5 : vector<128x32xf32>
    %cst_11 = arith.constant dense<0.000000e+00> : vector<128xf32>
    %13 = vector.multi_reduction <add>, %12, %cst_11 [1] : vector<128x32xf32> to vector<128xf32>
    %14 = vector.shape_cast %13 : vector<128xf32> to vector<128x1xf32>
    %cst_12 = arith.constant 3.200000e+01 : f32
    %15 = vector.broadcast %cst_12 : f32 to vector<128x1xf32>
    %16 = arith.divf %14, %15 : vector<128x1xf32>
    %17 = arith.mulf %11, %11 : vector<128x1xf32>
    %18 = arith.subf %16, %17 : vector<128x1xf32>
    %cst_13 = arith.constant 0.000000e+00 : f32
    %19 = vector.broadcast %cst_13 : f32 to vector<128x1xf32>
    %20 = arith.maximumf %18, %19 : vector<128x1xf32>
    %21 = vector.broadcast %11 : vector<128x1xf32> to vector<128x32xf32>
    %22 = arith.subf %5, %21 : vector<128x32xf32>
    %cst_14 = arith.constant 9.99999974E-6 : f32
    %23 = vector.broadcast %cst_14 : f32 to vector<128x1xf32>
    %24 = arith.addf %20, %23 : vector<128x1xf32>
    %25 = math.rsqrt %24 : vector<128x1xf32>
    %26 = vector.broadcast %25 : vector<128x1xf32> to vector<128x32xf32>
    %27 = arith.mulf %22, %26 : vector<128x32xf32>
    %28 = vector.broadcast %6 : vector<1x32xf32> to vector<128x32xf32>
    %29 = arith.mulf %27, %28 : vector<128x32xf32>
    %30 = vector.broadcast %7 : vector<1x32xf32> to vector<128x32xf32>
    %31 = arith.addf %29, %30 : vector<128x32xf32>
    %cst_15 = arith.constant 0.000000e+00 : f32
    %32 = vector.broadcast %cst_15 : f32 to vector<128x32xf32>
    %33 = arith.maximumf %31, %32 : vector<128x32xf32>
    %c0_16 = arith.constant 0 : index
    %c0_17 = arith.constant 0 : index
    %34 = vector.load %arg6[%c0_16, %c0_17] : memref<32x32xf32, #tpu.memory_space<vmem>>, vector<32x32xf32>
    %cst_18 = arith.constant dense<0.000000e+00> : vector<128x32xf32>
    %35 = tpu.matmul %33, %34, %cst_18 {dimension_numbers = #tpu.dot_dimension_numbers<[1], [0], [0], [1], [0, 0, 1, 1], [], []>} : vector<128x32xf32>, vector<32x32xf32>, vector<128x32xf32> -> vector<128x32xf32>
    %c0_19 = arith.constant 0 : index
    %c0_20 = arith.constant 0 : index
    %36 = vector.load %arg7[%c0_19, %c0_20] : memref<1x32xf32, #tpu.memory_space<vmem>>, vector<1x32xf32>
    %37 = vector.broadcast %36 : vector<1x32xf32> to vector<128x32xf32>
    %38 = arith.addf %35, %37 : vector<128x32xf32>
    %c0_21 = arith.constant 0 : index
    %c0_22 = arith.constant 0 : index
    %39 = vector.load %arg8[%c0_21, %c0_22] : memref<1x32xf32, #tpu.memory_space<vmem>>, vector<1x32xf32>
    %c0_23 = arith.constant 0 : index
    %c0_24 = arith.constant 0 : index
    %40 = vector.load %arg9[%c0_23, %c0_24] : memref<1x32xf32, #tpu.memory_space<vmem>>, vector<1x32xf32>
    %cst_25 = arith.constant dense<0.000000e+00> : vector<128xf32>
    %41 = vector.multi_reduction <add>, %38, %cst_25 [1] : vector<128x32xf32> to vector<128xf32>
    %42 = vector.shape_cast %41 : vector<128xf32> to vector<128x1xf32>
    %cst_26 = arith.constant 3.200000e+01 : f32
    %43 = vector.broadcast %cst_26 : f32 to vector<128x1xf32>
    %44 = arith.divf %42, %43 : vector<128x1xf32>
    %45 = arith.mulf %38, %38 : vector<128x32xf32>
    %cst_27 = arith.constant dense<0.000000e+00> : vector<128xf32>
    %46 = vector.multi_reduction <add>, %45, %cst_27 [1] : vector<128x32xf32> to vector<128xf32>
    %47 = vector.shape_cast %46 : vector<128xf32> to vector<128x1xf32>
    %cst_28 = arith.constant 3.200000e+01 : f32
    %48 = vector.broadcast %cst_28 : f32 to vector<128x1xf32>
    %49 = arith.divf %47, %48 : vector<128x1xf32>
    %50 = arith.mulf %44, %44 : vector<128x1xf32>
    %51 = arith.subf %49, %50 : vector<128x1xf32>
    %cst_29 = arith.constant 0.000000e+00 : f32
    %52 = vector.broadcast %cst_29 : f32 to vector<128x1xf32>
    %53 = arith.maximumf %51, %52 : vector<128x1xf32>
    %54 = vector.broadcast %44 : vector<128x1xf32> to vector<128x32xf32>
    %55 = arith.subf %38, %54 : vector<128x32xf32>
    %cst_30 = arith.constant 9.99999974E-6 : f32
    %56 = vector.broadcast %cst_30 : f32 to vector<128x1xf32>
    %57 = arith.addf %53, %56 : vector<128x1xf32>
    %58 = math.rsqrt %57 : vector<128x1xf32>
    %59 = vector.broadcast %58 : vector<128x1xf32> to vector<128x32xf32>
    %60 = arith.mulf %55, %59 : vector<128x32xf32>
    %61 = vector.broadcast %39 : vector<1x32xf32> to vector<128x32xf32>
    %62 = arith.mulf %60, %61 : vector<128x32xf32>
    %63 = vector.broadcast %40 : vector<1x32xf32> to vector<128x32xf32>
    %64 = arith.addf %62, %63 : vector<128x32xf32>
    %cst_31 = arith.constant 0.000000e+00 : f32
    %65 = vector.broadcast %cst_31 : f32 to vector<128x32xf32>
    %66 = arith.maximumf %64, %65 : vector<128x32xf32>
    %c0_32 = arith.constant 0 : index
    %c0_33 = arith.constant 0 : index
    %67 = vector.load %arg10[%c0_32, %c0_33] : memref<32x128xf32, #tpu.memory_space<vmem>>, vector<32x128xf32>
    %cst_34 = arith.constant dense<0.000000e+00> : vector<128x128xf32>
    %68 = tpu.matmul %66, %67, %cst_34 {dimension_numbers = #tpu.dot_dimension_numbers<[1], [0], [0], [1], [0, 0, 1, 1], [], []>} : vector<128x32xf32>, vector<32x128xf32>, vector<128x128xf32> -> vector<128x128xf32>
    %c0_35 = arith.constant 0 : index
    %c0_36 = arith.constant 0 : index
    %69 = vector.load %arg11[%c0_35, %c0_36] : memref<1x128xf32, #tpu.memory_space<vmem>>, vector<1x128xf32>
    %70 = vector.broadcast %69 : vector<1x128xf32> to vector<128x128xf32>
    %71 = arith.addf %68, %70 : vector<128x128xf32>
    %c0_37 = arith.constant 0 : index
    %c0_38 = arith.constant 0 : index
    %72 = vector.load %arg12[%c0_37, %c0_38] : memref<128x128xf32, #tpu.memory_space<vmem>>, vector<128x128xf32>
    tpu.vector_store %arg12[%c0_37, %c0_38], %71 {strides = array<i32>} : memref<128x128xf32, #tpu.memory_space<vmem>>, vector<128x128xf32>,
    return
  }
  func.func @transform_0(%arg0: i32) -> (i32, i32) {
    %c0_i32 = arith.constant 0 : i32
    %c0_i32_0 = arith.constant 0 : i32
    return %arg0, %c0_i32 : i32, i32
  }
  func.func @transform_1(%arg0: i32) -> (i32, i32) {
    %c0_i32 = arith.constant 0 : i32
    %c0_i32_0 = arith.constant 0 : i32
    %c0_i32_1 = arith.constant 0 : i32
    return %c0_i32, %c0_i32_0 : i32, i32
  }
  func.func @transform_2(%arg0: i32) -> (i32, i32) {
    %c0_i32 = arith.constant 0 : i32
    %c0_i32_0 = arith.constant 0 : i32
    %c0_i32_1 = arith.constant 0 : i32
    return %c0_i32, %c0_i32_0 : i32, i32
  }
  func.func @transform_3(%arg0: i32) -> (i32, i32) {
    %c0_i32 = arith.constant 0 : i32
    %c0_i32_0 = arith.constant 0 : i32
    %c0_i32_1 = arith.constant 0 : i32
    return %c0_i32, %c0_i32_0 : i32, i32
  }
  func.func @transform_4(%arg0: i32) -> (i32, i32) {
    %c0_i32 = arith.constant 0 : i32
    %c0_i32_0 = arith.constant 0 : i32
    %c0_i32_1 = arith.constant 0 : i32
    return %c0_i32, %c0_i32_0 : i32, i32
  }
  func.func @transform_5(%arg0: i32) -> (i32, i32) {
    %c0_i32 = arith.constant 0 : i32
    %c0_i32_0 = arith.constant 0 : i32
    %c0_i32_1 = arith.constant 0 : i32
    return %c0_i32, %c0_i32_0 : i32, i32
  }
  func.func @transform_6(%arg0: i32) -> (i32, i32) {
    %c0_i32 = arith.constant 0 : i32
    %c0_i32_0 = arith.constant 0 : i32
    %c0_i32_1 = arith.constant 0 : i32
    return %c0_i32, %c0_i32_0 : i32, i32
  }
  func.func @transform_7(%arg0: i32) -> (i32, i32) {
    %c0_i32 = arith.constant 0 : i32
    %c0_i32_0 = arith.constant 0 : i32
    %c0_i32_1 = arith.constant 0 : i32
    return %c0_i32, %c0_i32_0 : i32, i32
  }
  func.func @transform_8(%arg0: i32) -> (i32, i32) {
    %c0_i32 = arith.constant 0 : i32
    %c0_i32_0 = arith.constant 0 : i32
    %c0_i32_1 = arith.constant 0 : i32
    return %c0_i32, %c0_i32_0 : i32, i32
  }
  func.func @transform_9(%arg0: i32) -> (i32, i32) {
    %c0_i32 = arith.constant 0 : i32
    %c0_i32_0 = arith.constant 0 : i32
    %c0_i32_1 = arith.constant 0 : i32
    return %c0_i32, %c0_i32_0 : i32, i32
  }
  func.func @transform_10(%arg0: i32) -> (i32, i32) {
    %c0_i32 = arith.constant 0 : i32
    %c0_i32_0 = arith.constant 0 : i32
    %c0_i32_1 = arith.constant 0 : i32
    return %c0_i32, %c0_i32_0 : i32, i32
  }
  func.func @transform_11(%arg0: i32) -> (i32, i32) {
    %c0_i32 = arith.constant 0 : i32
    %c0_i32_0 = arith.constant 0 : i32
    return %arg0, %c0_i32 : i32, i32
  }
}

</mosaic_0001>

<llo_original>
// kernel: tpu_custom_call.1
$region0: #{tpu_custom_call.1}
  #allocation0 [shape = 'u32[]', space=smem, size = 0x4, offset = 0x4, fixed_abs, tag = 'smem constant byte address 0x4 - core index']
  #allocation1 [shape = 'u32[72,128]{1,0:T(1,128)}', space=vmem, size = 0x9000, scoped, tag = 'internal scratch']
  %s0 = inlined_call_operand.vmem [shape: f32[256,16], index: 0, kind: input, shape index: {}]
  %s1 = inlined_call_operand.vmem [shape: f32[16,32], index: 1, kind: input, shape index: {}]
  %s2 = inlined_call_operand.vmem [shape: f32[1,32], index: 2, kind: input, shape index: {}]
  %s3 = inlined_call_operand.vmem [shape: f32[1,32], index: 3, kind: input, shape index: {}]
  %s4 = inlined_call_operand.vmem [shape: f32[1,32], index: 4, kind: input, shape index: {}]
  %s5 = inlined_call_operand.vmem [shape: f32[32,32], index: 5, kind: input, shape index: {}]
  %s6 = inlined_call_operand.vmem [shape: f32[1,32], index: 6, kind: input, shape index: {}]
  %s7 = inlined_call_operand.vmem [shape: f32[1,32], index: 7, kind: input, shape index: {}]
  %s8 = inlined_call_operand.vmem [shape: f32[1,32], index: 8, kind: input, shape index: {}]
  %s9 = inlined_call_operand.vmem [shape: f32[32,128], index: 9, kind: input, shape index: {}]
  %s10 = inlined_call_operand.vmem [shape: f32[1,128], index: 10, kind: input, shape index: {}]
  %s11 = inlined_call_operand.hbm [shape: f32[256,128], index: 11, kind: output, shape index: {}]
  %s12 = sld [smem:[#allocation0]]
  $region77: #{tpu_custom_call.1} parent=0
    _
  %s14 = ssub.s32 1, %s12
  %s15 = scalar_select 0, %s14, %s12
  $region1: #{tpu_custom_call.1} parent=0
    #allocation2 [shape = 'u8[131072]{0}', space=vmem, size = 0x20000, scoped, tag = 'output window, operand 0']
    #allocation3 [shape = 's32[2]{0}', space=sflag, size = 0x8, scoped, tag = 'scoped memory for tpu_custom_call.1']
    %16 = vsyncpa [#allocation3], 0
    %s17 = scalar_lea.sflag [#allocation3], 1
    %18 = vsyncpa %s17, 0
    loop: start=0, step=1, limit=4
    $region2: #{tpu_custom_call.1} parent=1 // loop_pre_header
      _
    $region3: #{tpu_custom_call.1} parent=1 // loop_header
      %s20 = sphi 0, %s24
      %p21 = scmp.ge.s32.totalorder %s20, 4
      %s30 = sphi 0, %s32
      %s33 = sphi 0, %s30
      %s34 = sphi 0, %s33
      %s50 = sphi 0, %s34
      %s54 = sphi 0, %s54
      %s56 = sphi 0, %s54
      %s57 = sphi 0, %s56
      %s71 = sphi 0, %s57
      %s75 = sphi 0, %s75
      %s77 = sphi 0, %s75
      %s78 = sphi 0, %s77
      %s92 = sphi 0, %s78
      %s96 = sphi 0, %s96
      %s98 = sphi 0, %s96
      %s99 = sphi 0, %s98
      %s113 = sphi 0, %s99
      %s117 = sphi 0, %s117
      %s119 = sphi 0, %s117
      %s120 = sphi 0, %s119
      %s134 = sphi 0, %s120
      %s138 = sphi 0, %s138
      %s140 = sphi 0, %s138
      %s141 = sphi 0, %s140
      %s155 = sphi 0, %s141
      %s159 = sphi 0, %s159
      %s161 = sphi 0, %s159
      %s162 = sphi 0, %s161
      %s176 = sphi 0, %s162
      %s180 = sphi 0, %s180
      %s182 = sphi 0, %s180
      %s183 = sphi 0, %s182
      %s197 = sphi 0, %s183
      %s201 = sphi 0, %s201
      %s203 = sphi 0, %s201
      %s204 = sphi 0, %s203
      %s218 = sphi 0, %s204
      %s222 = sphi 0, %s222
      %s224 = sphi 0, %s222
      %s225 = sphi 0, %s224
      %s239 = sphi 0, %s225
      %s243 = sphi 0, %s243
      %s245 = sphi 0, %s243
      %s246 = sphi 0, %s245
      %s260 = sphi 0, %s246
      %s266 = sphi 0, %s268
      %s269 = sphi 0, %s266
      %s270 = sphi 0, %s269
      %s286 = sphi 0, %s270
    $region4: #{tpu_custom_call.1} parent=1 // loop_header_branch
      %23 = sbr.rel (%p21) target = $region8
    $region5: #{tpu_custom_call.1} parent=1 // loop_body
      %s25 = ssub.s32 %s20, 1
      %s26 = ssub.s32 %s20, 2
      %s27 = sadd.s32 %s20, 1
      %s28 = ssub.s32 %s20, %s27
      %p29 = scmp.eq.s32.totalorder %s28, 0
      %s31 = sadd.s32 %s30, 1
      %s32 = scalar_select %p29, %s30, %s31
      %p35 = pneg %p29
      %p36 = scmp.eq.s32.totalorder %s20, 1
      %p37 = por %p35, %p36
      %p38 = scmp.ne.s32.totalorder %s30, %s33
      %p39 = scmp.eq.s32.totalorder %s20, 0
      %p40 = por %p38, %p39
      %p41 = scmp.ne.s32.totalorder %s30, %s33
      %p42 = scmp.eq.s32.totalorder %s25, 1
      %p43 = por %p41, %p42
      %p44 = scmp.ne.s32.totalorder %s33, %s34
      %p45 = scmp.eq.s32.totalorder %s25, 0
      %p46 = por %p44, %p45
      %p47 = scmp.ne.s32.totalorder %s33, %s34
      %p48 = scmp.eq.s32.totalorder %s26, 1
      %p49 = por %p47, %p48
      %p51 = scmp.ne.s32.totalorder %s34, %s50
      %p52 = scmp.eq.s32.totalorder %s26, 0
      %p53 = por %p51, %p52
      %s55 = sadd.s32 %s54, 1
      %p58 = scmp.eq.s32.totalorder %s20, 1
      %p59 = scmp.ne.s32.totalorder %s54, %s56
      %p60 = scmp.eq.s32.totalorder %s20, 0
      %p61 = por %p59, %p60
      %p62 = scmp.ne.s32.totalorder %s54, %s56
      %p63 = scmp.eq.s32.totalorder %s25, 1
      %p64 = por %p62, %p63
      %p65 = scmp.ne.s32.totalorder %s56, %s57
      %p66 = scmp.eq.s32.totalorder %s25, 0
      %p67 = por %p65, %p66
      %p68 = scmp.ne.s32.totalorder %s56, %s57
      %p69 = scmp.eq.s32.totalorder %s26, 1
      %p70 = por %p68, %p69
      %p72 = scmp.ne.s32.totalorder %s57, %s71
      %p73 = scmp.eq.s32.totalorder %s26, 0
      %p74 = por %p72, %p73
      %s76 = sadd.s32 %s75, 1
      %p79 = scmp.eq.s32.totalorder %s20, 1
      %p80 = scmp.ne.s32.totalorder %s75, %s77
      %p81 = scmp.eq.s32.totalorder %s20, 0
      %p82 = por %p80, %p81
      %p83 = scmp.ne.s32.totalorder %s75, %s77
      %p84 = scmp.eq.s32.totalorder %s25, 1
      %p85 = por %p83, %p84
      %p86 = scmp.ne.s32.totalorder %s77, %s78
      %p87 = scmp.eq.s32.totalorder %s25, 0
      %p88 = por %p86, %p87
      %p89 = scmp.ne.s32.totalorder %s77, %s78
      %p90 = scmp.eq.s32.totalorder %s26, 1
      %p91 = por %p89, %p90
      %p93 = scmp.ne.s32.totalorder %s78, %s92
      %p94 = scmp.eq.s32.totalorder %s26, 0
      %p95 = por %p93, %p94
      %s97 = sadd.s32 %s96, 1
      %p100 = scmp.eq.s32.totalorder %s20, 1
      %p101 = scmp.ne.s32.totalorder %s96, %s98
      %p102 = scmp.eq.s32.totalorder %s20, 0
      %p103 = por %p101, %p102
      %p104 = scmp.ne.s32.totalorder %s96, %s98
      %p105 = scmp.eq.s32.totalorder %s25, 1
      %p106 = por %p104, %p105
      %p107 = scmp.ne.s32.totalorder %s98, %s99
      %p108 = scmp.eq.s32.totalorder %s25, 0
      %p109 = por %p107, %p108
      %p110 = scmp.ne.s32.totalorder %s98, %s99
      %p111 = scmp.eq.s32.totalorder %s26, 1
      %p112 = por %p110, %p111
      %p114 = scmp.ne.s32.totalorder %s99, %s113
      %p115 = scmp.eq.s32.totalorder %s26, 0
      %p116 = por %p114, %p115
      %s118 = sadd.s32 %s117, 1
      %p121 = scmp.eq.s32.totalorder %s20, 1
      %p122 = scmp.ne.s32.totalorder %s117, %s119
      %p123 = scmp.eq.s32.totalorder %s20, 0
      %p124 = por %p122, %p123
      %p125 = scmp.ne.s32.totalorder %s117, %s119
      %p126 = scmp.eq.s32.totalorder %s25, 1
      %p127 = por %p125, %p126
      %p128 = scmp.ne.s32.totalorder %s119, %s120
      %p129 = scmp.eq.s32.totalorder %s25, 0
      %p130 = por %p128, %p129
      %p131 = scmp.ne.s32.totalorder %s119, %s120
      %p132 = scmp.eq.s32.totalorder %s26, 1
      %p133 = por %p131, %p132
      %p135 = scmp.ne.s32.totalorder %s120, %s134
      %p136 = scmp.eq.s32.totalorder %s26, 0
      %p137 = por %p135, %p136
      %s139 = sadd.s32 %s138, 1
      %p142 = scmp.eq.s32.totalorder %s20, 1
      %p143 = scmp.ne.s32.totalorder %s138, %s140
      %p144 = scmp.eq.s32.totalorder %s20, 0
      %p145 = por %p143, %p144
      %p146 = scmp.ne.s32.totalorder %s138, %s140
      %p147 = scmp.eq.s32.totalorder %s25, 1
      %p148 = por %p146, %p147
      %p149 = scmp.ne.s32.totalorder %s140, %s141
      %p150 = scmp.eq.s32.totalorder %s25, 0
      %p151 = por %p149, %p150
      %p152 = scmp.ne.s32.totalorder %s140, %s141
      %p153 = scmp.eq.s32.totalorder %s26, 1
      %p154 = por %p152, %p153
      %p156 = scmp.ne.s32.totalorder %s141, %s155
      %p157 = scmp.eq.s32.totalorder %s26, 0
      %p158 = por %p156, %p157
      %s160 = sadd.s32 %s159, 1
      %p163 = scmp.eq.s32.totalorder %s20, 1
      %p164 = scmp.ne.s32.totalorder %s159, %s161
      %p165 = scmp.eq.s32.totalorder %s20, 0
      %p166 = por %p164, %p165
      %p167 = scmp.ne.s32.totalorder %s159, %s161
      %p168 = scmp.eq.s32.totalorder %s25, 1
      %p169 = por %p167, %p168
      %p170 = scmp.ne.s32.totalorder %s161, %s162
      %p171 = scmp.eq.s32.totalorder %s25, 0
      %p172 = por %p170, %p171
      %p173 = scmp.ne.s32.totalorder %s161, %s162
      %p174 = scmp.eq.s32.totalorder %s26, 1
      %p175 = por %p173, %p174
      %p177 = scmp.ne.s32.totalorder %s162, %s176
      %p178 = scmp.eq.s32.totalorder %s26, 0
      %p179 = por %p177, %p178
      %s181 = sadd.s32 %s180, 1
      %p184 = scmp.eq.s32.totalorder %s20, 1
      %p185 = scmp.ne.s32.totalorder %s180, %s182
      %p186 = scmp.eq.s32.totalorder %s20, 0
      %p187 = por %p185, %p186
      %p188 = scmp.ne.s32.totalorder %s180, %s182
      %p189 = scmp.eq.s32.totalorder %s25, 1
      %p190 = por %p188, %p189
      %p191 = scmp.ne.s32.totalorder %s182, %s183
      %p192 = scmp.eq.s32.totalorder %s25, 0
      %p193 = por %p191, %p192
      %p194 = scmp.ne.s32.totalorder %s182, %s183
      %p195 = scmp.eq.s32.totalorder %s26, 1
      %p196 = por %p194, %p195
      %p198 = scmp.ne.s32.totalorder %s183, %s197
      %p199 = scmp.eq.s32.totalorder %s26, 0
      %p200 = por %p198, %p199
      %s202 = sadd.s32 %s201, 1
      %p205 = scmp.eq.s32.totalorder %s20, 1
      %p206 = scmp.ne.s32.totalorder %s201, %s203
      %p207 = scmp.eq.s32.totalorder %s20, 0
      %p208 = por %p206, %p207
      %p209 = scmp.ne.s32.totalorder %s201, %s203
      %p210 = scmp.eq.s32.totalorder %s25, 1
      %p211 = por %p209, %p210
      %p212 = scmp.ne.s32.totalorder %s203, %s204
      %p213 = scmp.eq.s32.totalorder %s25, 0
      %p214 = por %p212, %p213
      %p215 = scmp.ne.s32.totalorder %s203, %s204
      %p216 = scmp.eq.s32.totalorder %s26, 1
      %p217 = por %p215, %p216
      %p219 = scmp.ne.s32.totalorder %s204, %s218
      %p220 = scmp.eq.s32.totalorder %s26, 0
      %p221 = por %p219, %p220
      %s223 = sadd.s32 %s222, 1
      %p226 = scmp.eq.s32.totalorder %s20, 1
      %p227 = scmp.ne.s32.totalorder %s222, %s224
      %p228 = scmp.eq.s32.totalorder %s20, 0
      %p229 = por %p227, %p228
      %p230 = scmp.ne.s32.totalorder %s222, %s224
      %p231 = scmp.eq.s32.totalorder %s25, 1
      %p232 = por %p230, %p231
      %p233 = scmp.ne.s32.totalorder %s224, %s225
      %p234 = scmp.eq.s32.totalorder %s25, 0
      %p235 = por %p233, %p234
      %p236 = scmp.ne.s32.totalorder %s224, %s225
      %p237 = scmp.eq.s32.totalorder %s26, 1
      %p238 = por %p236, %p237
      %p240 = scmp.ne.s32.totalorder %s225, %s239
      %p241 = scmp.eq.s32.totalorder %s26, 0
      %p242 = por %p240, %p241
      %s244 = sadd.s32 %s243, 1
      %p247 = scmp.eq.s32.totalorder %s20, 1
      %p248 = scmp.ne.s32.totalorder %s243, %s245
      %p249 = scmp.eq.s32.totalorder %s20, 0
      %p250 = por %p248, %p249
      %p251 = scmp.ne.s32.totalorder %s243, %s245
      %p252 = scmp.eq.s32.totalorder %s25, 1
      %p253 = por %p251, %p252
      %p254 = scmp.ne.s32.totalorder %s245, %s246
      %p255 = scmp.eq.s32.totalorder %s25, 0
      %p256 = por %p254, %p255
      %p257 = scmp.ne.s32.totalorder %s245, %s246
      %p258 = scmp.eq.s32.totalorder %s26, 1
      %p259 = por %p257, %p258
      %p261 = scmp.ne.s32.totalorder %s246, %s260
      %p262 = scmp.eq.s32.totalorder %s26, 0
      %p263 = por %p261, %p262
      %s264 = ssub.s32 %s20, %s27
      %p265 = scmp.eq.s32.totalorder %s264, 0
      %s267 = sadd.s32 %s266, 1
      %s268 = scalar_select %p265, %s266, %s267
      %p271 = pneg %p265
      %p272 = scmp.eq.s32.totalorder %s20, 1
      %p273 = por %p271, %p272
      %p274 = scmp.ne.s32.totalorder %s266, %s269
      %p275 = scmp.eq.s32.totalorder %s20, 0
      %p276 = por %p274, %p275
      %p277 = scmp.ne.s32.totalorder %s266, %s269
      %p278 = scmp.eq.s32.totalorder %s25, 1
      %p279 = por %p277, %p278
      %p280 = scmp.ne.s32.totalorder %s269, %s270
      %p281 = scmp.eq.s32.totalorder %s25, 0
      %p282 = por %p280, %p281
      %p283 = scmp.ne.s32.totalorder %s269, %s270
      %p284 = scmp.eq.s32.totalorder %s26, 1
      %p285 = por %p283, %p284
      %p287 = scmp.ne.s32.totalorder %s270, %s286
      %p288 = scmp.eq.s32.totalorder %s26, 0
      %p289 = por %p287, %p288
      %p290 = scmp.le.s32.totalorder 1, %s20
      %p291 = scmp.lt.s32.totalorder %s20, 3
      %p292 = pnand %p290, %p291
      %p293 = pneg %p292
      // Predicated region
      $region9: #{tpu_custom_call.1} parent=5 // pred_check
        _
      $region10: #{tpu_custom_call.1} parent=5 // pred_check_branch
        %295 = sbr.rel (%p292) target = $region12
      $region11: #{tpu_custom_call.1} parent=5 // pred_region
        %s296 = ssub.s32 %s20, 1
        // Predicated region
        $region13: #{tpu_custom_call.1} parent=11 // pred_check
          %p297 = pneg %p67
        $region14: #{tpu_custom_call.1} parent=11 // pred_check_branch
          %299 = sbr.rel (%p297) target = $region16
        $region15: #{tpu_custom_call.1} parent=11 // pred_region
          _
        $region16: #{tpu_custom_call.1} parent=11 // pred_fallthru
          _
        // Predicated region
        $region17: #{tpu_custom_call.1} parent=11 // pred_check
          %p300 = pneg %p88
        $region18: #{tpu_custom_call.1} parent=11 // pred_check_branch
          %302 = sbr.rel (%p300) target = $region20
        $region19: #{tpu_custom_call.1} parent=11 // pred_region
          _
        $region20: #{tpu_custom_call.1} parent=11 // pred_fallthru
          _
        // Predicated region
        $region21: #{tpu_custom_call.1} parent=11 // pred_check
          %p303 = pneg %p109
        $region22: #{tpu_custom_call.1} parent=11 // pred_check_branch
          %305 = sbr.rel (%p303) target = $region24
        $region23: #{tpu_custom_call.1} parent=11 // pred_region
          _
        $region24: #{tpu_custom_call.1} parent=11 // pred_fallthru
          _
        // Predicated region
        $region25: #{tpu_custom_call.1} parent=11 // pred_check
          %p306 = pneg %p130
        $region26: #{tpu_custom_call.1} parent=11 // pred_check_branch
          %308 = sbr.rel (%p306) target = $region28
        $region27: #{tpu_custom_call.1} parent=11 // pred_region
          _
        $region28: #{tpu_custom_call.1} parent=11 // pred_fallthru
          _
        // Predicated region
        $region29: #{tpu_custom_call.1} parent=11 // pred_check
          %p309 = pneg %p151
        $region30: #{tpu_custom_call.1} parent=11 // pred_check_branch
          %311 = sbr.rel (%p309) target = $region32
        $region31: #{tpu_custom_call.1} parent=11 // pred_region
          _
        $region32: #{tpu_custom_call.1} parent=11 // pred_fallthru
          _
        // Predicated region
        $region33: #{tpu_custom_call.1} parent=11 // pred_check
          %p312 = pneg %p172
        $region34: #{tpu_custom_call.1} parent=11 // pred_check_branch
          %314 = sbr.rel (%p312) target = $region36
        $region35: #{tpu_custom_call.1} parent=11 // pred_region
          _
        $region36: #{tpu_custom_call.1} parent=11 // pred_fallthru
          _
        // Predicated region
        $region37: #{tpu_custom_call.1} parent=11 // pred_check
          %p315 = pneg %p193
        $region38: #{tpu_custom_call.1} parent=11 // pred_check_branch
          %317 = sbr.rel (%p315) target = $region40
        $region39: #{tpu_custom_call.1} parent=11 // pred_region
          _
        $region40: #{tpu_custom_call.1} parent=11 // pred_fallthru
          _
        // Predicated region
        $region41: #{tpu_custom_call.1} parent=11 // pred_check
          %p318 = pneg %p214
        $region42: #{tpu_custom_call.1} parent=11 // pred_check_branch
          %320 = sbr.rel (%p318) target = $region44
        $region43: #{tpu_custom_call.1} parent=11 // pred_region
          _
        $region44: #{tpu_custom_call.1} parent=11 // pred_fallthru
          _
        // Predicated region
        $region45: #{tpu_custom_call.1} parent=11 // pred_check
          %p321 = pneg %p235
        $region46: #{tpu_custom_call.1} parent=11 // pred_check_branch
          %323 = sbr.rel (%p321) target = $region48
        $region47: #{tpu_custom_call.1} parent=11 // pred_region
          _
        $region48: #{tpu_custom_call.1} parent=11 // pred_fallthru
          _
        // Predicated region
        $region49: #{tpu_custom_call.1} parent=11 // pred_check
          %p324 = pneg %p256
        $region50: #{tpu_custom_call.1} parent=11 // pred_check_branch
          %326 = sbr.rel (%p324) target = $region52
        $region51: #{tpu_custom_call.1} parent=11 // pred_region
          _
        $region52: #{tpu_custom_call.1} parent=11 // pred_fallthru
          _
      $region12: #{tpu_custom_call.1} parent=5 // pred_fallthru
        _
      %p327 = scmp.lt.s32.totalorder %s20, 2
      // Predicated region
      $region53: #{tpu_custom_call.1} parent=5 // pred_check
        %p328 = pneg %p327
      $region54: #{tpu_custom_call.1} parent=5 // pred_check_branch
        %330 = sbr.rel (%p328) target = $region56
      $region55: #{tpu_custom_call.1} parent=5 // pred_region
        // Predicated region
        $region57: #{tpu_custom_call.1} parent=55 // pred_check
          %p331 = pneg %p40
        $region58: #{tpu_custom_call.1} parent=55 // pred_check_branch
          %333 = sbr.rel (%p331) target = $region60
        $region59: #{tpu_custom_call.1} parent=55 // pred_region
          %s334 = smul.u32 16, %s20
          %p335 = scmp.lt.s32.totalorder %s334, 31
          %s336 = scalar_select %p335, %s334, 31
          %s337 = smul.addr %s336, 8
          %s338 = scalar_lea.vmem %s0, %s337
          %s339 = smul.u32 16, %s20
        $region60: #{tpu_custom_call.1} parent=55 // pred_fallthru
          _
      $region56: #{tpu_custom_call.1} parent=5 // pred_fallthru
        _
      %p340 = scmp.le.s32.totalorder 1, %s20
      %p341 = scmp.lt.s32.totalorder %s20, 3
      %p342 = pnand %p340, %p341
      %p343 = pneg %p342
      // Predicated region
      $region61: #{tpu_custom_call.1} parent=5 // pred_check
        _
      $region62: #{tpu_custom_call.1} parent=5 // pred_check_branch
        %345 = sbr.rel (%p342) target = $region64
      $region63: #{tpu_custom_call.1} parent=5 // pred_region
        %s346 = ssub.s32 %s20, 1
        %s347 = smul.u32 16, %s25
        %p348 = scmp.lt.s32.totalorder %s347, 31
        %s349 = scalar_select %p348, %s347, 31
        %s350 = smul.addr %s349, 8
        %s351 = scalar_lea.vmem %s0, %s350
        %p352 = pneg %p46
        %p353 = pneg %p43
        %p354 = pneg %p67
        %p355 = pneg %p64
        %p356 = pneg %p88
        %p357 = pneg %p85
        %p358 = pneg %p109
        %p359 = pneg %p106
        %p360 = pneg %p130
        %p361 = pneg %p127
        %p362 = pneg %p151
        %p363 = pneg %p148
        %p364 = pneg %p172
        %p365 = pneg %p169
        %p366 = pneg %p193
        %p367 = pneg %p190
        %p368 = pneg %p214
        %p369 = pneg %p211
        %p370 = pneg %p235
        %p371 = pneg %p232
        %p372 = pneg %p256
        %p373 = pneg %p253
        %p374 = pneg %p282
        %p375 = pneg %p279
        %s376 = sand.u32 %s269, 1
        %s377 = scalar_lea.sflag [#allocation3], %s376
        %s378 = sand.u32 %s269, 1
        %s379 = smul.addr %s378, 128
        %s380 = scalar_lea.vmem [#allocation2], %s379
        %s381 = smul.u32 16, %s25
        %p382 = scmp.lt.s32.totalorder %s381, 31
        %s383 = scalar_select %p382, %s381, 31
        %s384 = smul.addr %s383, 8
        %s385 = scalar_lea.vmem %s0, %s384
        %s386 = smul.u32 16, %s25
        %s387 = smul.u32 16, %s25
        %v388 = vld [vmem:[%s385] sm:$0xff]
        %v389 = vld [vmem:[%s385 + $0x8] sm:$0xff]
        %v390 = vld [vmem:[%s385 + $0x10] sm:$0xff]
        %v391 = vld [vmem:[%s385 + $0x18] sm:$0xff]
        %v392 = vld [vmem:[%s385 + $0x20] sm:$0xff]
        %v393 = vld [vmem:[%s385 + $0x28] sm:$0xff]
        %v394 = vld [vmem:[%s385 + $0x30] sm:$0xff]
        %v395 = vld [vmem:[%s385 + $0x38] sm:$0xff]
        %v396 = vld [vmem:[%s385 + $0x40] sm:$0xff]
        %v397 = vld [vmem:[%s385 + $0x48] sm:$0xff]
        %v398 = vld [vmem:[%s385 + $0x50] sm:$0xff]
        %v399 = vld [vmem:[%s385 + $0x58] sm:$0xff]
        %v400 = vld [vmem:[%s385 + $0x60] sm:$0xff]
        %v401 = vld [vmem:[%s385 + $0x68] sm:$0xff]
        %v402 = vld [vmem:[%s385 + $0x70] sm:$0xff]
        %v403 = vld [vmem:[%s385 + $0x78] sm:$0xff]
        %v404 = vld [vmem:[%s1] sm:$0xff]
        %v405 = vld [vmem:[%s1 + $0x8] sm:$0xff]
        %v406 = vld [vmem:[%s2] sm:$0x1]
        %v408 = vperm.slane %v406, 0
        %vm410 = vcmask 130048
        %v412 = vsel %vm410, %v388, 0
        %v415 = vsel %vm410, %v389, 0
        %v418 = vsel %vm410, %v390, 0
        %v421 = vsel %vm410, %v391, 0
        %v424 = vsel %vm410, %v392, 0
        %v427 = vsel %vm410, %v393, 0
        %v430 = vsel %vm410, %v394, 0
        %v433 = vsel %vm410, %v395, 0
        %v436 = vsel %vm410, %v396, 0
        %v439 = vsel %vm410, %v397, 0
        %v442 = vsel %vm410, %v398, 0
        %v445 = vsel %vm410, %v399, 0
        %v448 = vsel %vm410, %v400, 0
        %v451 = vsel %vm410, %v401, 0
        %v454 = vsel %vm410, %v402, 0
        %v457 = vsel %vm410, %v403, 0
        %459 = vmatpush.msra.mxu0 0.0
        %460 = vmatpush.msra.mxu0 0.0
        %461 = vmatpush.msra.mxu0 0.0
        %462 = vmatpush.msra.mxu0 0.0
        %463 = vmatpush.msra.mxu0 0.0
        %464 = vmatpush.msra.mxu0 0.0
        %465 = vmatpush.msra.mxu0 0.0
        %466 = vmatpush.msra.mxu0 0.0
        %467 = vmatpush.msra.mxu0 0.0
        %468 = vmatpush.msra.mxu0 0.0
        %469 = vmatpush.msra.mxu0 0.0
        %470 = vmatpush.msra.mxu0 0.0
        %471 = vmatpush.msra.mxu0 0.0
        %472 = vmatpush.msra.mxu0 0.0
        %473 = vmatpush.msra.mxu0 %v405
        %474 = vmatpush.msra.mxu0 %v404
        %475 = vmatmul.f32.gmra.mxu0 %v412
        %v476 = vpop.f32.mrf.mxu0
        %v477 = vadd.f32 %v408, %v476
        %478 = vmatmul.f32.gmra.mxu0 %v415
        %v479 = vpop.f32.mrf.mxu0
        %v480 = vadd.f32 %v408, %v479
        %481 = vmatmul.f32.gmra.mxu0 %v418
        %v482 = vpop.f32.mrf.mxu0
        %v483 = vadd.f32 %v408, %v482
        %484 = vmatmul.f32.gmra.mxu0 %v421
        %v485 = vpop.f32.mrf.mxu0
        %v486 = vadd.f32 %v408, %v485
        %487 = vmatmul.f32.gmra.mxu0 %v424
        %v488 = vpop.f32.mrf.mxu0
        %v489 = vadd.f32 %v408, %v488
        %490 = vmatmul.f32.gmra.mxu0 %v427
        %v491 = vpop.f32.mrf.mxu0
        %v492 = vadd.f32 %v408, %v491
        %493 = vmatmul.f32.gmra.mxu0 %v430
        %v494 = vpop.f32.mrf.mxu0
        %v495 = vadd.f32 %v408, %v494
        %496 = vmatmul.f32.gmra.mxu0 %v433
        %v497 = vpop.f32.mrf.mxu0
        %v498 = vadd.f32 %v408, %v497
        %499 = vmatmul.f32.gmra.mxu0 %v436
        %v500 = vpop.f32.mrf.mxu0
        %v501 = vadd.f32 %v408, %v500
        %502 = vmatmul.f32.gmra.mxu0 %v439
        %v503 = vpop.f32.mrf.mxu0
        %v504 = vadd.f32 %v408, %v503
        %505 = vmatmul.f32.gmra.mxu0 %v442
        %v506 = vpop.f32.mrf.mxu0
        %v507 = vadd.f32 %v408, %v506
        %508 = vmatmul.f32.gmra.mxu0 %v445
        %v509 = vpop.f32.mrf.mxu0
        %v510 = vadd.f32 %v408, %v509
        %511 = vmatmul.f32.gmra.mxu0 %v448
        %v512 = vpop.f32.mrf.mxu0
        %v513 = vadd.f32 %v408, %v512
        %514 = vmatmul.f32.gmra.mxu0 %v451
        %v515 = vpop.f32.mrf.mxu0
        %v516 = vadd.f32 %v408, %v515
        %517 = vmatmul.f32.gmra.mxu0 %v454
        %v518 = vpop.f32.mrf.mxu0
        %v519 = vadd.f32 %v408, %v518
        %520 = vmatmul.f32.gmra.mxu0 %v457
        %v521 = vpop.f32.mrf.mxu0
        %v522 = vadd.f32 %v408, %v521
        %523 = vdwg.mxu0
        %v524 = vld [vmem:[%s3] sm:$0x1]
        %v525 = vld [vmem:[%s4] sm:$0x1]
        %vm526 = vcmask 261120
        %v527 = vsel %vm526, %v477, 0.0
        %528 = vadd.xlane.f32.xlu0 %v527
        %v529 = vpop.xlane.xlu0 %528
        %v530 = vsel %vm526, %v480, 0.0
        %531 = vadd.xlane.f32.xlu0 %v530
        %v532 = vpop.xlane.xlu0 %531
        %v533 = vsel %vm526, %v483, 0.0
        %534 = vadd.xlane.f32.xlu0 %v533
        %v535 = vpop.xlane.xlu0 %534
        %v536 = vsel %vm526, %v486, 0.0
        %537 = vadd.xlane.f32.xlu0 %v536
        %v538 = vpop.xlane.xlu0 %537
        %v539 = vsel %vm526, %v489, 0.0
        %540 = vadd.xlane.f32.xlu0 %v539
        %v541 = vpop.xlane.xlu0 %540
        %v542 = vsel %vm526, %v492, 0.0
        %543 = vadd.xlane.f32.xlu0 %v542
        %v544 = vpop.xlane.xlu0 %543
        %v545 = vsel %vm526, %v495, 0.0
        %546 = vadd.xlane.f32.xlu0 %v545
        %v547 = vpop.xlane.xlu0 %546
        %v548 = vsel %vm526, %v498, 0.0
        %549 = vadd.xlane.f32.xlu0 %v548
        %v550 = vpop.xlane.xlu0 %549
        %v551 = vsel %vm526, %v501, 0.0
        %552 = vadd.xlane.f32.xlu0 %v551
        %v553 = vpop.xlane.xlu0 %552
        %v554 = vsel %vm526, %v504, 0.0
        %555 = vadd.xlane.f32.xlu0 %v554
        %v556 = vpop.xlane.xlu0 %555
        %v557 = vsel %vm526, %v507, 0.0
        %558 = vadd.xlane.f32.xlu0 %v557
        %v559 = vpop.xlane.xlu0 %558
        %v560 = vsel %vm526, %v510, 0.0
        %561 = vadd.xlane.f32.xlu0 %v560
        %v562 = vpop.xlane.xlu0 %561
        %v563 = vsel %vm526, %v513, 0.0
        %564 = vadd.xlane.f32.xlu0 %v563
        %v565 = vpop.xlane.xlu0 %564
        %v566 = vsel %vm526, %v516, 0.0
        %567 = vadd.xlane.f32.xlu0 %v566
        %v568 = vpop.xlane.xlu0 %567
        %v569 = vsel %vm526, %v519, 0.0
        %570 = vadd.xlane.f32.xlu0 %v569
        %v571 = vpop.xlane.xlu0 %570
        %v572 = vsel %vm526, %v522, 0.0
        %573 = vadd.xlane.f32.xlu0 %v572
        %v574 = vpop.xlane.xlu0 %573
        %v575 = vrcp.pop 32.0
        %v576 = vmul.f32 32.0, %v575
        %v577 = vsub.f32 1.0, %v576
        %v578 = vmul.f32 %v575, %v577
        %v579 = vadd.f32 %v575, %v578
        %vm580 = vweird.f32 %v575
        %v581 = vsel %vm580, %v575, %v579
        %v582 = vmul.f32 %v529, %v581
        %v583 = vmul.f32 %v532, %v581
        %v584 = vmul.f32 %v535, %v581
        %v585 = vmul.f32 %v538, %v581
        %v586 = vmul.f32 %v541, %v581
        %v587 = vmul.f32 %v544, %v581
        %v588 = vmul.f32 %v547, %v581
        %v589 = vmul.f32 %v550, %v581
        %v590 = vmul.f32 %v553, %v581
        %v591 = vmul.f32 %v556, %v581
        %v592 = vmul.f32 %v559, %v581
        %v593 = vmul.f32 %v562, %v581
        %v594 = vmul.f32 %v565, %v581
        %v595 = vmul.f32 %v568, %v581
        %v596 = vmul.f32 %v571, %v581
        %v597 = vmul.f32 %v574, %v581
        %v598 = vmul.f32 %v477, %v477
        %v599 = vmul.f32 %v480, %v480
        %v600 = vmul.f32 %v483, %v483
        %v601 = vmul.f32 %v486, %v486
        %v602 = vmul.f32 %v489, %v489
        %v603 = vmul.f32 %v492, %v492
        %v604 = vmul.f32 %v495, %v495
        %v605 = vmul.f32 %v498, %v498
        %v606 = vmul.f32 %v501, %v501
        %v607 = vmul.f32 %v504, %v504
        %v608 = vmul.f32 %v507, %v507
        %v609 = vmul.f32 %v510, %v510
        %v610 = vmul.f32 %v513, %v513
        %v611 = vmul.f32 %v516, %v516
        %v612 = vmul.f32 %v519, %v519
        %v613 = vmul.f32 %v522, %v522
        %v614 = vsel %vm526, %v598, 0.0
        %615 = vadd.xlane.f32.xlu0 %v614
        %v616 = vpop.xlane.xlu0 %615
        %v617 = vsel %vm526, %v599, 0.0
        %618 = vadd.xlane.f32.xlu0 %v617
        %v619 = vpop.xlane.xlu0 %618
        %v620 = vsel %vm526, %v600, 0.0
        %621 = vadd.xlane.f32.xlu0 %v620
        %v622 = vpop.xlane.xlu0 %621
        %v623 = vsel %vm526, %v601, 0.0
        %624 = vadd.xlane.f32.xlu0 %v623
        %v625 = vpop.xlane.xlu0 %624
        %v626 = vsel %vm526, %v602, 0.0
        %627 = vadd.xlane.f32.xlu0 %v626
        %v628 = vpop.xlane.xlu0 %627
        %v629 = vsel %vm526, %v603, 0.0
        %630 = vadd.xlane.f32.xlu0 %v629
        %v631 = vpop.xlane.xlu0 %630
        %v632 = vsel %vm526, %v604, 0.0
        %633 = vadd.xlane.f32.xlu0 %v632
        %v634 = vpop.xlane.xlu0 %633
        %v635 = vsel %vm526, %v605, 0.0
        %636 = vadd.xlane.f32.xlu0 %v635
        %v637 = vpop.xlane.xlu0 %636
        %v638 = vsel %vm526, %v606, 0.0
        %639 = vadd.xlane.f32.xlu0 %v638
        %v640 = vpop.xlane.xlu0 %639
        %v641 = vsel %vm526, %v607, 0.0
        %642 = vadd.xlane.f32.xlu0 %v641
        %v643 = vpop.xlane.xlu0 %642
        %v644 = vsel %vm526, %v608, 0.0
        %645 = vadd.xlane.f32.xlu0 %v644
        %v646 = vpop.xlane.xlu0 %645
        %v647 = vsel %vm526, %v609, 0.0
        %648 = vadd.xlane.f32.xlu0 %v647
        %v649 = vpop.xlane.xlu0 %648
        %v650 = vsel %vm526, %v610, 0.0
        %651 = vadd.xlane.f32.xlu0 %v650
        %v652 = vpop.xlane.xlu0 %651
        %v653 = vsel %vm526, %v611, 0.0
        %654 = vadd.xlane.f32.xlu0 %v653
        %v655 = vpop.xlane.xlu0 %654
        %v656 = vsel %vm526, %v612, 0.0
        %657 = vadd.xlane.f32.xlu0 %v656
        %v658 = vpop.xlane.xlu0 %657
        %v659 = vsel %vm526, %v613, 0.0
        %660 = vadd.xlane.f32.xlu0 %v659
        %v661 = vpop.xlane.xlu0 %660
        %v662 = vmul.f32 %v616, %v581
        %v663 = vmul.f32 %v619, %v581
        %v664 = vmul.f32 %v622, %v581
        %v665 = vmul.f32 %v625, %v581
        %v666 = vmul.f32 %v628, %v581
        %v667 = vmul.f32 %v631, %v581
        %v668 = vmul.f32 %v634, %v581
        %v669 = vmul.f32 %v637, %v581
        %v670 = vmul.f32 %v640, %v581
        %v671 = vmul.f32 %v643, %v581
        %v672 = vmul.f32 %v646, %v581
        %v673 = vmul.f32 %v649, %v581
        %v674 = vmul.f32 %v652, %v581
        %v675 = vmul.f32 %v655, %v581
        %v676 = vmul.f32 %v658, %v581
        %v677 = vmul.f32 %v661, %v581
        %v678 = vmul.f32 %v582, %v582
        %v679 = vmul.f32 %v583, %v583
        %v680 = vmul.f32 %v584, %v584
        %v681 = vmul.f32 %v585, %v585
        %v682 = vmul.f32 %v586, %v586
        %v683 = vmul.f32 %v587, %v587
        %v684 = vmul.f32 %v588, %v588
        %v685 = vmul.f32 %v589, %v589
        %v686 = vmul.f32 %v590, %v590
        %v687 = vmul.f32 %v591, %v591
        %v688 = vmul.f32 %v592, %v592
        %v689 = vmul.f32 %v593, %v593
        %v690 = vmul.f32 %v594, %v594
        %v691 = vmul.f32 %v595, %v595
        %v692 = vmul.f32 %v596, %v596
        %v693 = vmul.f32 %v597, %v597
        %v694 = vsub.f32 %v662, %v678
        %v695 = vsub.f32 %v663, %v679
        %v696 = vsub.f32 %v664, %v680
        %v697 = vsub.f32 %v665, %v681
        %v698 = vsub.f32 %v666, %v682
        %v699 = vsub.f32 %v667, %v683
        %v700 = vsub.f32 %v668, %v684
        %v701 = vsub.f32 %v669, %v685
        %v702 = vsub.f32 %v670, %v686
        %v703 = vsub.f32 %v671, %v687
        %v704 = vsub.f32 %v672, %v688
        %v705 = vsub.f32 %v673, %v689
        %v706 = vsub.f32 %v674, %v690
        %v707 = vsub.f32 %v675, %v691
        %v708 = vsub.f32 %v676, %v692
        %v709 = vsub.f32 %v677, %v693
        %v710 = vmax.f32 %v694, 0.0
        %v711 = vmax.f32 %v695, 0.0
        %v712 = vmax.f32 %v696, 0.0
        %v713 = vmax.f32 %v697, 0.0
        %v714 = vmax.f32 %v698, 0.0
        %v715 = vmax.f32 %v699, 0.0
        %v716 = vmax.f32 %v700, 0.0
        %v717 = vmax.f32 %v701, 0.0
        %v718 = vmax.f32 %v702, 0.0
        %v719 = vmax.f32 %v703, 0.0
        %v720 = vmax.f32 %v704, 0.0
        %v721 = vmax.f32 %v705, 0.0
        %v722 = vmax.f32 %v706, 0.0
        %v723 = vmax.f32 %v707, 0.0
        %v724 = vmax.f32 %v708, 0.0
        %v725 = vmax.f32 %v709, 0.0
        %v726 = vsub.f32 %v477, %v582
        %v727 = vsub.f32 %v480, %v583
        %v728 = vsub.f32 %v483, %v584
        %v729 = vsub.f32 %v486, %v585
        %v730 = vsub.f32 %v489, %v586
        %v731 = vsub.f32 %v492, %v587
        %v732 = vsub.f32 %v495, %v588
        %v733 = vsub.f32 %v498, %v589
        %v734 = vsub.f32 %v501, %v590
        %v735 = vsub.f32 %v504, %v591
        %v736 = vsub.f32 %v507, %v592
        %v737 = vsub.f32 %v510, %v593
        %v738 = vsub.f32 %v513, %v594
        %v739 = vsub.f32 %v516, %v595
        %v740 = vsub.f32 %v519, %v596
        %v741 = vsub.f32 %v522, %v597
        %v742 = vadd.f32 %v710, 1e-05
        %v743 = vadd.f32 %v711, 1e-05
        %v744 = vadd.f32 %v712, 1e-05
        %v745 = vadd.f32 %v713, 1e-05
        %v746 = vadd.f32 %v714, 1e-05
        %v747 = vadd.f32 %v715, 1e-05
        %v748 = vadd.f32 %v716, 1e-05
        %v749 = vadd.f32 %v717, 1e-05
        %v750 = vadd.f32 %v718, 1e-05
        %v751 = vadd.f32 %v719, 1e-05
        %v752 = vadd.f32 %v720, 1e-05
        %v753 = vadd.f32 %v721, 1e-05
        %v754 = vadd.f32 %v722, 1e-05
        %v755 = vadd.f32 %v723, 1e-05
        %v756 = vadd.f32 %v724, 1e-05
        %v757 = vadd.f32 %v725, 1e-05
        %v758 = vrsqrt.pop %v742
        %v759 = vmul.f32 %v758, %v742
        %v760 = vmul.f32 %v759, %v758
        %v761 = vmul.f32 0.5, %v760
        %v762 = vsub.f32 1.5, %v761
        %v763 = vmul.f32 %v758, %v762
        %vm764 = vweird.f32 %v742
        %vm765 = vweird.f32 %v758
        %vm766 = vmor %vm764, %vm765
        %v767 = vsel %vm766, %v758, %v763
        %v768 = vrsqrt.pop %v743
        %v769 = vmul.f32 %v768, %v743
        %v770 = vmul.f32 %v769, %v768
        %v771 = vmul.f32 0.5, %v770
        %v772 = vsub.f32 1.5, %v771
        %v773 = vmul.f32 %v768, %v772
        %vm774 = vweird.f32 %v743
        %vm775 = vweird.f32 %v768
        %vm776 = vmor %vm774, %vm775
        %v777 = vsel %vm776, %v768, %v773
        %v778 = vrsqrt.pop %v744
        %v779 = vmul.f32 %v778, %v744
        %v780 = vmul.f32 %v779, %v778
        %v781 = vmul.f32 0.5, %v780
        %v782 = vsub.f32 1.5, %v781
        %v783 = vmul.f32 %v778, %v782
        %vm784 = vweird.f32 %v744
        %vm785 = vweird.f32 %v778
        %vm786 = vmor %vm784, %vm785
        %v787 = vsel %vm786, %v778, %v783
        %v788 = vrsqrt.pop %v745
        %v789 = vmul.f32 %v788, %v745
        %v790 = vmul.f32 %v789, %v788
        %v791 = vmul.f32 0.5, %v790
        %v792 = vsub.f32 1.5, %v791
        %v793 = vmul.f32 %v788, %v792
        %vm794 = vweird.f32 %v745
        %vm795 = vweird.f32 %v788
        %vm796 = vmor %vm794, %vm795
        %v797 = vsel %vm796, %v788, %v793
        %v798 = vrsqrt.pop %v746
        %v799 = vmul.f32 %v798, %v746
        %v800 = vmul.f32 %v799, %v798
        %v801 = vmul.f32 0.5, %v800
        %v802 = vsub.f32 1.5, %v801
        %v803 = vmul.f32 %v798, %v802
        %vm804 = vweird.f32 %v746
        %vm805 = vweird.f32 %v798
        %vm806 = vmor %vm804, %vm805
        %v807 = vsel %vm806, %v798, %v803
        %v808 = vrsqrt.pop %v747
        %v809 = vmul.f32 %v808, %v747
        %v810 = vmul.f32 %v809, %v808
        %v811 = vmul.f32 0.5, %v810
        %v812 = vsub.f32 1.5, %v811
        %v813 = vmul.f32 %v808, %v812
        %vm814 = vweird.f32 %v747
        %vm815 = vweird.f32 %v808
        %vm816 = vmor %vm814, %vm815
        %v817 = vsel %vm816, %v808, %v813
        %v818 = vrsqrt.pop %v748
        %v819 = vmul.f32 %v818, %v748
        %v820 = vmul.f32 %v819, %v818
        %v821 = vmul.f32 0.5, %v820
        %v822 = vsub.f32 1.5, %v821
        %v823 = vmul.f32 %v818, %v822
        %vm824 = vweird.f32 %v748
        %vm825 = vweird.f32 %v818
        %vm826 = vmor %vm824, %vm825
        %v827 = vsel %vm826, %v818, %v823
        %v828 = vrsqrt.pop %v749
        %v829 = vmul.f32 %v828, %v749
        %v830 = vmul.f32 %v829, %v828
        %v831 = vmul.f32 0.5, %v830
        %v832 = vsub.f32 1.5, %v831
        %v833 = vmul.f32 %v828, %v832
        %vm834 = vweird.f32 %v749
        %vm835 = vweird.f32 %v828
        %vm836 = vmor %vm834, %vm835
        %v837 = vsel %vm836, %v828, %v833
        %v838 = vrsqrt.pop %v750
        %v839 = vmul.f32 %v838, %v750
        %v840 = vmul.f32 %v839, %v838
        %v841 = vmul.f32 0.5, %v840
        %v842 = vsub.f32 1.5, %v841
        %v843 = vmul.f32 %v838, %v842
        %vm844 = vweird.f32 %v750
        %vm845 = vweird.f32 %v838
        %vm846 = vmor %vm844, %vm845
        %v847 = vsel %vm846, %v838, %v843
        %v848 = vrsqrt.pop %v751
        %v849 = vmul.f32 %v848, %v751
        %v850 = vmul.f32 %v849, %v848
        %v851 = vmul.f32 0.5, %v850
        %v852 = vsub.f32 1.5, %v851
        %v853 = vmul.f32 %v848, %v852
        %vm854 = vweird.f32 %v751
        %vm855 = vweird.f32 %v848
        %vm856 = vmor %vm854, %vm855
        %v857 = vsel %vm856, %v848, %v853
        %v858 = vrsqrt.pop %v752
        %v859 = vmul.f32 %v858, %v752
        %v860 = vmul.f32 %v859, %v858
        %v861 = vmul.f32 0.5, %v860
        %v862 = vsub.f32 1.5, %v861
        %v863 = vmul.f32 %v858, %v862
        %vm864 = vweird.f32 %v752
        %vm865 = vweird.f32 %v858
        %vm866 = vmor %vm864, %vm865
        %v867 = vsel %vm866, %v858, %v863
        %v868 = vrsqrt.pop %v753
        %v869 = vmul.f32 %v868, %v753
        %v870 = vmul.f32 %v869, %v868
        %v871 = vmul.f32 0.5, %v870
        %v872 = vsub.f32 1.5, %v871
        %v873 = vmul.f32 %v868, %v872
        %vm874 = vweird.f32 %v753
        %vm875 = vweird.f32 %v868
        %vm876 = vmor %vm874, %vm875
        %v877 = vsel %vm876, %v868, %v873
        %v878 = vrsqrt.pop %v754
        %v879 = vmul.f32 %v878, %v754
        %v880 = vmul.f32 %v879, %v878
        %v881 = vmul.f32 0.5, %v880
        %v882 = vsub.f32 1.5, %v881
        %v883 = vmul.f32 %v878, %v882
        %vm884 = vweird.f32 %v754
        %vm885 = vweird.f32 %v878
        %vm886 = vmor %vm884, %vm885
        %v887 = vsel %vm886, %v878, %v883
        %v888 = vrsqrt.pop %v755
        %v889 = vmul.f32 %v888, %v755
        %v890 = vmul.f32 %v889, %v888
        %v891 = vmul.f32 0.5, %v890
        %v892 = vsub.f32 1.5, %v891
        %v893 = vmul.f32 %v888, %v892
        %vm894 = vweird.f32 %v755
        %vm895 = vweird.f32 %v888
        %vm896 = vmor %vm894, %vm895
        %v897 = vsel %vm896, %v888, %v893
        %v898 = vrsqrt.pop %v756
        %v899 = vmul.f32 %v898, %v756
        %v900 = vmul.f32 %v899, %v898
        %v901 = vmul.f32 0.5, %v900
        %v902 = vsub.f32 1.5, %v901
        %v903 = vmul.f32 %v898, %v902
        %vm904 = vweird.f32 %v756
        %vm905 = vweird.f32 %v898
        %vm906 = vmor %vm904, %vm905
        %v907 = vsel %vm906, %v898, %v903
        %v908 = vrsqrt.pop %v757
        %v909 = vmul.f32 %v908, %v757
        %v910 = vmul.f32 %v909, %v908
        %v911 = vmul.f32 0.5, %v910
        %v912 = vsub.f32 1.5, %v911
        %v913 = vmul.f32 %v908, %v912
        %vm914 = vweird.f32 %v757
        %vm915 = vweird.f32 %v908
        %vm916 = vmor %vm914, %vm915
        %v917 = vsel %vm916, %v908, %v913
        %v918 = vmul.f32 %v726, %v767
        %v919 = vmul.f32 %v727, %v777
        %v920 = vmul.f32 %v728, %v787
        %v921 = vmul.f32 %v729, %v797
        %v922 = vmul.f32 %v730, %v807
        %v923 = vmul.f32 %v731, %v817
        %v924 = vmul.f32 %v732, %v827
        %v925 = vmul.f32 %v733, %v837
        %v926 = vmul.f32 %v734, %v847
        %v927 = vmul.f32 %v735, %v857
        %v928 = vmul.f32 %v736, %v867
        %v929 = vmul.f32 %v737, %v877
        %v930 = vmul.f32 %v738, %v887
        %v931 = vmul.f32 %v739, %v897
        %v932 = vmul.f32 %v740, %v907
        %v933 = vmul.f32 %v741, %v917
        %v935 = vperm.slane %v524, 0
        %v937 = vmul.f32 %v918, %v935
        %v938 = vmul.f32 %v919, %v935
        %v939 = vmul.f32 %v920, %v935
        %v940 = vmul.f32 %v921, %v935
        %v941 = vmul.f32 %v922, %v935
        %v942 = vmul.f32 %v923, %v935
        %v943 = vmul.f32 %v924, %v935
        %v944 = vmul.f32 %v925, %v935
        %v945 = vmul.f32 %v926, %v935
        %v946 = vmul.f32 %v927, %v935
        %v947 = vmul.f32 %v928, %v935
        %v948 = vmul.f32 %v929, %v935
        %v949 = vmul.f32 %v930, %v935
        %v950 = vmul.f32 %v931, %v935
        %v951 = vmul.f32 %v932, %v935
        %v952 = vmul.f32 %v933, %v935
        %v954 = vperm.slane %v525, 0
        %v956 = vadd.f32 %v937, %v954
        %v957 = vadd.f32 %v938, %v954
        %v958 = vadd.f32 %v939, %v954
        %v959 = vadd.f32 %v940, %v954
        %v960 = vadd.f32 %v941, %v954
        %v961 = vadd.f32 %v942, %v954
        %v962 = vadd.f32 %v943, %v954
        %v963 = vadd.f32 %v944, %v954
        %v964 = vadd.f32 %v945, %v954
        %v965 = vadd.f32 %v946, %v954
        %v966 = vadd.f32 %v947, %v954
        %v967 = vadd.f32 %v948, %v954
        %v968 = vadd.f32 %v949, %v954
        %v969 = vadd.f32 %v950, %v954
        %v970 = vadd.f32 %v951, %v954
        %v971 = vadd.f32 %v952, %v954
        %v972 = vmax.f32 %v956, 0.0
        %v973 = vmax.f32 %v957, 0.0
        %v974 = vmax.f32 %v958, 0.0
        %v975 = vmax.f32 %v959, 0.0
        %v976 = vmax.f32 %v960, 0.0
        %v977 = vmax.f32 %v961, 0.0
        %v978 = vmax.f32 %v962, 0.0
        %v979 = vmax.f32 %v963, 0.0
        %v980 = vmax.f32 %v964, 0.0
        %v981 = vmax.f32 %v965, 0.0
        %v982 = vmax.f32 %v966, 0.0
        %v983 = vmax.f32 %v967, 0.0
        %v984 = vmax.f32 %v968, 0.0
        %v985 = vmax.f32 %v969, 0.0
        %v986 = vmax.f32 %v970, 0.0
        %v987 = vmax.f32 %v971, 0.0
        %v988 = vld [vmem:[%s5] sm:$0xff]
        %v989 = vld [vmem:[%s5 + $0x8] sm:$0xff]
        %v990 = vld [vmem:[%s5 + $0x10] sm:$0xff]
        %v991 = vld [vmem:[%s5 + $0x18] sm:$0xff]
        %v992 = vld [vmem:[%s6] sm:$0x1]
        %v994 = vperm.slane %v992, 0
        %v997 = vsel %vm526, %v972, 0
        %v1000 = vsel %vm526, %v973, 0
        %v1003 = vsel %vm526, %v974, 0
        %v1006 = vsel %vm526, %v975, 0
        %v1009 = vsel %vm526, %v976, 0
        %v1012 = vsel %vm526, %v977, 0
        %v1015 = vsel %vm526, %v978, 0
        %v1018 = vsel %vm526, %v979, 0
        %v1021 = vsel %vm526, %v980, 0
        %v1024 = vsel %vm526, %v981, 0
        %v1027 = vsel %vm526, %v982, 0
        %v1030 = vsel %vm526, %v983, 0
        %v1033 = vsel %vm526, %v984, 0
        %v1036 = vsel %vm526, %v985, 0
        %v1039 = vsel %vm526, %v986, 0
        %v1042 = vsel %vm526, %v987, 0
        %1044 = vmatpush.msra.mxu0 0.0
        %1045 = vmatpush.msra.mxu0 0.0
        %1046 = vmatpush.msra.mxu0 0.0
        %1047 = vmatpush.msra.mxu0 0.0
        %1048 = vmatpush.msra.mxu0 0.0
        %1049 = vmatpush.msra.mxu0 0.0
        %1050 = vmatpush.msra.mxu0 0.0
        %1051 = vmatpush.msra.mxu0 0.0
        %1052 = vmatpush.msra.mxu0 0.0
        %1053 = vmatpush.msra.mxu0 0.0
        %1054 = vmatpush.msra.mxu0 0.0
        %1055 = vmatpush.msra.mxu0 0.0
        %1056 = vmatpush.msra.mxu0 %v991
        %1057 = vmatpush.msra.mxu0 %v990
        %1058 = vmatpush.msra.mxu0 %v989
        %1059 = vmatpush.msra.mxu0 %v988
        %1060 = vmatmul.f32.gmra.mxu0 %v997
        %v1061 = vpop.f32.mrf.mxu0
        %v1062 = vadd.f32 %v994, %v1061
        %1063 = vmatmul.f32.gmra.mxu0 %v1000
        %v1064 = vpop.f32.mrf.mxu0
        %v1065 = vadd.f32 %v994, %v1064
        %1066 = vmatmul.f32.gmra.mxu0 %v1003
        %v1067 = vpop.f32.mrf.mxu0
        %v1068 = vadd.f32 %v994, %v1067
        %1069 = vmatmul.f32.gmra.mxu0 %v1006
        %v1070 = vpop.f32.mrf.mxu0
        %v1071 = vadd.f32 %v994, %v1070
        %1072 = vmatmul.f32.gmra.mxu0 %v1009
        %v1073 = vpop.f32.mrf.mxu0
        %v1074 = vadd.f32 %v994, %v1073
        %1075 = vmatmul.f32.gmra.mxu0 %v1012
        %v1076 = vpop.f32.mrf.mxu0
        %v1077 = vadd.f32 %v994, %v1076
        %1078 = vmatmul.f32.gmra.mxu0 %v1015
        %v1079 = vpop.f32.mrf.mxu0
        %v1080 = vadd.f32 %v994, %v1079
        %1081 = vmatmul.f32.gmra.mxu0 %v1018
        %v1082 = vpop.f32.mrf.mxu0
        %v1083 = vadd.f32 %v994, %v1082
        %1084 = vmatmul.f32.gmra.mxu0 %v1021
        %v1085 = vpop.f32.mrf.mxu0
        %v1086 = vadd.f32 %v994, %v1085
        %1087 = vmatmul.f32.gmra.mxu0 %v1024
        %v1088 = vpop.f32.mrf.mxu0
        %v1089 = vadd.f32 %v994, %v1088
        %1090 = vmatmul.f32.gmra.mxu0 %v1027
        %v1091 = vpop.f32.mrf.mxu0
        %v1092 = vadd.f32 %v994, %v1091
        %1093 = vmatmul.f32.gmra.mxu0 %v1030
        %v1094 = vpop.f32.mrf.mxu0
        %v1095 = vadd.f32 %v994, %v1094
        %1096 = vmatmul.f32.gmra.mxu0 %v1033
        %v1097 = vpop.f32.mrf.mxu0
        %v1098 = vadd.f32 %v994, %v1097
        %1099 = vmatmul.f32.gmra.mxu0 %v1036
        %v1100 = vpop.f32.mrf.mxu0
        %v1101 = vadd.f32 %v994, %v1100
        %1102 = vmatmul.f32.gmra.mxu0 %v1039
        %v1103 = vpop.f32.mrf.mxu0
        %v1104 = vadd.f32 %v994, %v1103
        %1105 = vmatmul.f32.gmra.mxu0 %v1042
        %v1106 = vpop.f32.mrf.mxu0
        %v1107 = vadd.f32 %v994, %v1106
        %1108 = vdwg.mxu0
        %v1109 = vld [vmem:[%s7] sm:$0x1]
        %v1110 = vld [vmem:[%s8] sm:$0x1]
        %v1111 = vsel %vm526, %v1062, 0.0
        %1112 = vadd.xlane.f32.xlu0 %v1111
        %v1113 = vpop.xlane.xlu0 %1112
        %v1114 = vsel %vm526, %v1065, 0.0
        %1115 = vadd.xlane.f32.xlu0 %v1114
        %v1116 = vpop.xlane.xlu0 %1115
        %v1117 = vsel %vm526, %v1068, 0.0
        %1118 = vadd.xlane.f32.xlu0 %v1117
        %v1119 = vpop.xlane.xlu0 %1118
        %v1120 = vsel %vm526, %v1071, 0.0
        %1121 = vadd.xlane.f32.xlu0 %v1120
        %v1122 = vpop.xlane.xlu0 %1121
        %v1123 = vsel %vm526, %v1074, 0.0
        %1124 = vadd.xlane.f32.xlu0 %v1123
        %v1125 = vpop.xlane.xlu0 %1124
        %v1126 = vsel %vm526, %v1077, 0.0
        %1127 = vadd.xlane.f32.xlu0 %v1126
        %v1128 = vpop.xlane.xlu0 %1127
        %v1129 = vsel %vm526, %v1080, 0.0
        %1130 = vadd.xlane.f32.xlu0 %v1129
        %v1131 = vpop.xlane.xlu0 %1130
        %v1132 = vsel %vm526, %v1083, 0.0
        %1133 = vadd.xlane.f32.xlu0 %v1132
        %v1134 = vpop.xlane.xlu0 %1133
        %v1135 = vsel %vm526, %v1086, 0.0
        %1136 = vadd.xlane.f32.xlu0 %v1135
        %v1137 = vpop.xlane.xlu0 %1136
        %v1138 = vsel %vm526, %v1089, 0.0
        %1139 = vadd.xlane.f32.xlu0 %v1138
        %v1140 = vpop.xlane.xlu0 %1139
        %v1141 = vsel %vm526, %v1092, 0.0
        %1142 = vadd.xlane.f32.xlu0 %v1141
        %v1143 = vpop.xlane.xlu0 %1142
        %v1144 = vsel %vm526, %v1095, 0.0
        %1145 = vadd.xlane.f32.xlu0 %v1144
        %v1146 = vpop.xlane.xlu0 %1145
        %v1147 = vsel %vm526, %v1098, 0.0
        %1148 = vadd.xlane.f32.xlu0 %v1147
        %v1149 = vpop.xlane.xlu0 %1148
        %v1150 = vsel %vm526, %v1101, 0.0
        %1151 = vadd.xlane.f32.xlu0 %v1150
        %v1152 = vpop.xlane.xlu0 %1151
        %v1153 = vsel %vm526, %v1104, 0.0
        %1154 = vadd.xlane.f32.xlu0 %v1153
        %v1155 = vpop.xlane.xlu0 %1154
        %v1156 = vsel %vm526, %v1107, 0.0
        %1157 = vadd.xlane.f32.xlu0 %v1156
        %v1158 = vpop.xlane.xlu0 %1157
        %v1159 = vmul.f32 %v1113, %v581
        %v1160 = vmul.f32 %v1116, %v581
        %v1161 = vmul.f32 %v1119, %v581
        %v1162 = vmul.f32 %v1122, %v581
        %v1163 = vmul.f32 %v1125, %v581
        %v1164 = vmul.f32 %v1128, %v581
        %v1165 = vmul.f32 %v1131, %v581
        %v1166 = vmul.f32 %v1134, %v581
        %v1167 = vmul.f32 %v1137, %v581
        %v1168 = vmul.f32 %v1140, %v581
        %v1169 = vmul.f32 %v1143, %v581
        %v1170 = vmul.f32 %v1146, %v581
        %v1171 = vmul.f32 %v1149, %v581
        %v1172 = vmul.f32 %v1152, %v581
        %v1173 = vmul.f32 %v1155, %v581
        %v1174 = vmul.f32 %v1158, %v581
        %v1175 = vmul.f32 %v1062, %v1062
        %v1176 = vmul.f32 %v1065, %v1065
        %v1177 = vmul.f32 %v1068, %v1068
        %v1178 = vmul.f32 %v1071, %v1071
        %v1179 = vmul.f32 %v1074, %v1074
        %v1180 = vmul.f32 %v1077, %v1077
        %v1181 = vmul.f32 %v1080, %v1080
        %v1182 = vmul.f32 %v1083, %v1083
        %v1183 = vmul.f32 %v1086, %v1086
        %v1184 = vmul.f32 %v1089, %v1089
        %v1185 = vmul.f32 %v1092, %v1092
        %v1186 = vmul.f32 %v1095, %v1095
        %v1187 = vmul.f32 %v1098, %v1098
        %v1188 = vmul.f32 %v1101, %v1101
        %v1189 = vmul.f32 %v1104, %v1104
        %v1190 = vmul.f32 %v1107, %v1107
        %v1191 = vsel %vm526, %v1175, 0.0
        %1192 = vadd.xlane.f32.xlu0 %v1191
        %v1193 = vpop.xlane.xlu0 %1192
        %v1194 = vsel %vm526, %v1176, 0.0
        %1195 = vadd.xlane.f32.xlu0 %v1194
        %v1196 = vpop.xlane.xlu0 %1195
        %v1197 = vsel %vm526, %v1177, 0.0
        %1198 = vadd.xlane.f32.xlu0 %v1197
        %v1199 = vpop.xlane.xlu0 %1198
        %v1200 = vsel %vm526, %v1178, 0.0
        %1201 = vadd.xlane.f32.xlu0 %v1200
        %v1202 = vpop.xlane.xlu0 %1201
        %v1203 = vsel %vm526, %v1179, 0.0
        %1204 = vadd.xlane.f32.xlu0 %v1203
        %v1205 = vpop.xlane.xlu0 %1204
        %v1206 = vsel %vm526, %v1180, 0.0
        %1207 = vadd.xlane.f32.xlu0 %v1206
        %v1208 = vpop.xlane.xlu0 %1207
        %v1209 = vsel %vm526, %v1181, 0.0
        %1210 = vadd.xlane.f32.xlu0 %v1209
        %v1211 = vpop.xlane.xlu0 %1210
        %v1212 = vsel %vm526, %v1182, 0.0
        %1213 = vadd.xlane.f32.xlu0 %v1212
        %v1214 = vpop.xlane.xlu0 %1213
        %v1215 = vsel %vm526, %v1183, 0.0
        %1216 = vadd.xlane.f32.xlu0 %v1215
        %v1217 = vpop.xlane.xlu0 %1216
        %v1218 = vsel %vm526, %v1184, 0.0
        %1219 = vadd.xlane.f32.xlu0 %v1218
        %v1220 = vpop.xlane.xlu0 %1219
        %v1221 = vsel %vm526, %v1185, 0.0
        %1222 = vadd.xlane.f32.xlu0 %v1221
        %v1223 = vpop.xlane.xlu0 %1222
        %v1224 = vsel %vm526, %v1186, 0.0
        %1225 = vadd.xlane.f32.xlu0 %v1224
        %v1226 = vpop.xlane.xlu0 %1225
        %v1227 = vsel %vm526, %v1187, 0.0
        %1228 = vadd.xlane.f32.xlu0 %v1227
        %v1229 = vpop.xlane.xlu0 %1228
        %v1230 = vsel %vm526, %v1188, 0.0
        %1231 = vadd.xlane.f32.xlu0 %v1230
        %v1232 = vpop.xlane.xlu0 %1231
        %v1233 = vsel %vm526, %v1189, 0.0
        %1234 = vadd.xlane.f32.xlu0 %v1233
        %v1235 = vpop.xlane.xlu0 %1234
        %v1236 = vsel %vm526, %v1190, 0.0
        %1237 = vadd.xlane.f32.xlu0 %v1236
        %v1238 = vpop.xlane.xlu0 %1237
        %v1239 = vmul.f32 %v1193, %v581
        %v1240 = vmul.f32 %v1196, %v581
        %v1241 = vmul.f32 %v1199, %v581
        %v1242 = vmul.f32 %v1202, %v581
        %v1243 = vmul.f32 %v1205, %v581
        %v1244 = vmul.f32 %v1208, %v581
        %v1245 = vmul.f32 %v1211, %v581
        %v1246 = vmul.f32 %v1214, %v581
        %v1247 = vmul.f32 %v1217, %v581
        %v1248 = vmul.f32 %v1220, %v581
        %v1249 = vmul.f32 %v1223, %v581
        %v1250 = vmul.f32 %v1226, %v581
        %v1251 = vmul.f32 %v1229, %v581
        %v1252 = vmul.f32 %v1232, %v581
        %v1253 = vmul.f32 %v1235, %v581
        %v1254 = vmul.f32 %v1238, %v581
        %v1255 = vmul.f32 %v1159, %v1159
        %v1256 = vmul.f32 %v1160, %v1160
        %v1257 = vmul.f32 %v1161, %v1161
        %v1258 = vmul.f32 %v1162, %v1162
        %v1259 = vmul.f32 %v1163, %v1163
        %v1260 = vmul.f32 %v1164, %v1164
        %v1261 = vmul.f32 %v1165, %v1165
        %v1262 = vmul.f32 %v1166, %v1166
        %v1263 = vmul.f32 %v1167, %v1167
        %v1264 = vmul.f32 %v1168, %v1168
        %v1265 = vmul.f32 %v1169, %v1169
        %v1266 = vmul.f32 %v1170, %v1170
        %v1267 = vmul.f32 %v1171, %v1171
        %v1268 = vmul.f32 %v1172, %v1172
        %v1269 = vmul.f32 %v1173, %v1173
        %v1270 = vmul.f32 %v1174, %v1174
        %v1271 = vsub.f32 %v1239, %v1255
        %v1272 = vsub.f32 %v1240, %v1256
        %v1273 = vsub.f32 %v1241, %v1257
        %v1274 = vsub.f32 %v1242, %v1258
        %v1275 = vsub.f32 %v1243, %v1259
        %v1276 = vsub.f32 %v1244, %v1260
        %v1277 = vsub.f32 %v1245, %v1261
        %v1278 = vsub.f32 %v1246, %v1262
        %v1279 = vsub.f32 %v1247, %v1263
        %v1280 = vsub.f32 %v1248, %v1264
        %v1281 = vsub.f32 %v1249, %v1265
        %v1282 = vsub.f32 %v1250, %v1266
        %v1283 = vsub.f32 %v1251, %v1267
        %v1284 = vsub.f32 %v1252, %v1268
        %v1285 = vsub.f32 %v1253, %v1269
        %v1286 = vsub.f32 %v1254, %v1270
        %v1287 = vmax.f32 %v1271, 0.0
        %v1288 = vmax.f32 %v1272, 0.0
        %v1289 = vmax.f32 %v1273, 0.0
        %v1290 = vmax.f32 %v1274, 0.0
        %v1291 = vmax.f32 %v1275, 0.0
        %v1292 = vmax.f32 %v1276, 0.0
        %v1293 = vmax.f32 %v1277, 0.0
        %v1294 = vmax.f32 %v1278, 0.0
        %v1295 = vmax.f32 %v1279, 0.0
        %v1296 = vmax.f32 %v1280, 0.0
        %v1297 = vmax.f32 %v1281, 0.0
        %v1298 = vmax.f32 %v1282, 0.0
        %v1299 = vmax.f32 %v1283, 0.0
        %v1300 = vmax.f32 %v1284, 0.0
        %v1301 = vmax.f32 %v1285, 0.0
        %v1302 = vmax.f32 %v1286, 0.0
        %v1303 = vsub.f32 %v1062, %v1159
        %v1304 = vsub.f32 %v1065, %v1160
        %v1305 = vsub.f32 %v1068, %v1161
        %v1306 = vsub.f32 %v1071, %v1162
        %v1307 = vsub.f32 %v1074, %v1163
        %v1308 = vsub.f32 %v1077, %v1164
        %v1309 = vsub.f32 %v1080, %v1165
        %v1310 = vsub.f32 %v1083, %v1166
        %v1311 = vsub.f32 %v1086, %v1167
        %v1312 = vsub.f32 %v1089, %v1168
        %v1313 = vsub.f32 %v1092, %v1169
        %v1314 = vsub.f32 %v1095, %v1170
        %v1315 = vsub.f32 %v1098, %v1171
        %v1316 = vsub.f32 %v1101, %v1172
        %v1317 = vsub.f32 %v1104, %v1173
        %v1318 = vsub.f32 %v1107, %v1174
        %v1319 = vadd.f32 %v1287, 1e-05
        %v1320 = vadd.f32 %v1288, 1e-05
        %v1321 = vadd.f32 %v1289, 1e-05
        %v1322 = vadd.f32 %v1290, 1e-05
        %v1323 = vadd.f32 %v1291, 1e-05
        %v1324 = vadd.f32 %v1292, 1e-05
        %v1325 = vadd.f32 %v1293, 1e-05
        %v1326 = vadd.f32 %v1294, 1e-05
        %v1327 = vadd.f32 %v1295, 1e-05
        %v1328 = vadd.f32 %v1296, 1e-05
        %v1329 = vadd.f32 %v1297, 1e-05
        %v1330 = vadd.f32 %v1298, 1e-05
        %v1331 = vadd.f32 %v1299, 1e-05
        %v1332 = vadd.f32 %v1300, 1e-05
        %v1333 = vadd.f32 %v1301, 1e-05
        %v1334 = vadd.f32 %v1302, 1e-05
        %v1335 = vrsqrt.pop %v1319
        %v1336 = vmul.f32 %v1335, %v1319
        %v1337 = vmul.f32 %v1336, %v1335
        %v1338 = vmul.f32 0.5, %v1337
        %v1339 = vsub.f32 1.5, %v1338
        %v1340 = vmul.f32 %v1335, %v1339
        %vm1341 = vweird.f32 %v1319
        %vm1342 = vweird.f32 %v1335
        %vm1343 = vmor %vm1341, %vm1342
        %v1344 = vsel %vm1343, %v1335, %v1340
        %v1345 = vrsqrt.pop %v1320
        %v1346 = vmul.f32 %v1345, %v1320
        %v1347 = vmul.f32 %v1346, %v1345
        %v1348 = vmul.f32 0.5, %v1347
        %v1349 = vsub.f32 1.5, %v1348
        %v1350 = vmul.f32 %v1345, %v1349
        %vm1351 = vweird.f32 %v1320
        %vm1352 = vweird.f32 %v1345
        %vm1353 = vmor %vm1351, %vm1352
        %v1354 = vsel %vm1353, %v1345, %v1350
        %v1355 = vrsqrt.pop %v1321
        %v1356 = vmul.f32 %v1355, %v1321
        %v1357 = vmul.f32 %v1356, %v1355
        %v1358 = vmul.f32 0.5, %v1357
        %v1359 = vsub.f32 1.5, %v1358
        %v1360 = vmul.f32 %v1355, %v1359
        %vm1361 = vweird.f32 %v1321
        %vm1362 = vweird.f32 %v1355
        %vm1363 = vmor %vm1361, %vm1362
        %v1364 = vsel %vm1363, %v1355, %v1360
        %v1365 = vrsqrt.pop %v1322
        %v1366 = vmul.f32 %v1365, %v1322
        %v1367 = vmul.f32 %v1366, %v1365
        %v1368 = vmul.f32 0.5, %v1367
        %v1369 = vsub.f32 1.5, %v1368
        %v1370 = vmul.f32 %v1365, %v1369
        %vm1371 = vweird.f32 %v1322
        %vm1372 = vweird.f32 %v1365
        %vm1373 = vmor %vm1371, %vm1372
        %v1374 = vsel %vm1373, %v1365, %v1370
        %v1375 = vrsqrt.pop %v1323
        %v1376 = vmul.f32 %v1375, %v1323
        %v1377 = vmul.f32 %v1376, %v1375
        %v1378 = vmul.f32 0.5, %v1377
        %v1379 = vsub.f32 1.5, %v1378
        %v1380 = vmul.f32 %v1375, %v1379
        %vm1381 = vweird.f32 %v1323
        %vm1382 = vweird.f32 %v1375
        %vm1383 = vmor %vm1381, %vm1382
        %v1384 = vsel %vm1383, %v1375, %v1380
        %v1385 = vrsqrt.pop %v1324
        %v1386 = vmul.f32 %v1385, %v1324
        %v1387 = vmul.f32 %v1386, %v1385
        %v1388 = vmul.f32 0.5, %v1387
        %v1389 = vsub.f32 1.5, %v1388
        %v1390 = vmul.f32 %v1385, %v1389
        %vm1391 = vweird.f32 %v1324
        %vm1392 = vweird.f32 %v1385
        %vm1393 = vmor %vm1391, %vm1392
        %v1394 = vsel %vm1393, %v1385, %v1390
        %v1395 = vrsqrt.pop %v1325
        %v1396 = vmul.f32 %v1395, %v1325
        %v1397 = vmul.f32 %v1396, %v1395
        %v1398 = vmul.f32 0.5, %v1397
        %v1399 = vsub.f32 1.5, %v1398
        %v1400 = vmul.f32 %v1395, %v1399
        %vm1401 = vweird.f32 %v1325
        %vm1402 = vweird.f32 %v1395
        %vm1403 = vmor %vm1401, %vm1402
        %v1404 = vsel %vm1403, %v1395, %v1400
        %v1405 = vrsqrt.pop %v1326
        %v1406 = vmul.f32 %v1405, %v1326
        %v1407 = vmul.f32 %v1406, %v1405
        %v1408 = vmul.f32 0.5, %v1407
        %v1409 = vsub.f32 1.5, %v1408
        %v1410 = vmul.f32 %v1405, %v1409
        %vm1411 = vweird.f32 %v1326
        %vm1412 = vweird.f32 %v1405
        %vm1413 = vmor %vm1411, %vm1412
        %v1414 = vsel %vm1413, %v1405, %v1410
        %v1415 = vrsqrt.pop %v1327
        %v1416 = vmul.f32 %v1415, %v1327
        %v1417 = vmul.f32 %v1416, %v1415
        %v1418 = vmul.f32 0.5, %v1417
        %v1419 = vsub.f32 1.5, %v1418
        %v1420 = vmul.f32 %v1415, %v1419
        %vm1421 = vweird.f32 %v1327
        %vm1422 = vweird.f32 %v1415
        %vm1423 = vmor %vm1421, %vm1422
        %v1424 = vsel %vm1423, %v1415, %v1420
        %v1425 = vrsqrt.pop %v1328
        %v1426 = vmul.f32 %v1425, %v1328
        %v1427 = vmul.f32 %v1426, %v1425
        %v1428 = vmul.f32 0.5, %v1427
        %v1429 = vsub.f32 1.5, %v1428
        %v1430 = vmul.f32 %v1425, %v1429
        %vm1431 = vweird.f32 %v1328
        %vm1432 = vweird.f32 %v1425
        %vm1433 = vmor %vm1431, %vm1432
        %v1434 = vsel %vm1433, %v1425, %v1430
        %v1435 = vrsqrt.pop %v1329
        %v1436 = vmul.f32 %v1435, %v1329
        %v1437 = vmul.f32 %v1436, %v1435
        %v1438 = vmul.f32 0.5, %v1437
        %v1439 = vsub.f32 1.5, %v1438
        %v1440 = vmul.f32 %v1435, %v1439
        %vm1441 = vweird.f32 %v1329
        %vm1442 = vweird.f32 %v1435
        %vm1443 = vmor %vm1441, %vm1442
        %v1444 = vsel %vm1443, %v1435, %v1440
        %v1445 = vrsqrt.pop %v1330
        %v1446 = vmul.f32 %v1445, %v1330
        %v1447 = vmul.f32 %v1446, %v1445
        %v1448 = vmul.f32 0.5, %v1447
        %v1449 = vsub.f32 1.5, %v1448
        %v1450 = vmul.f32 %v1445, %v1449
        %vm1451 = vweird.f32 %v1330
        %vm1452 = vweird.f32 %v1445
        %vm1453 = vmor %vm1451, %vm1452
        %v1454 = vsel %vm1453, %v1445, %v1450
        %v1455 = vrsqrt.pop %v1331
        %v1456 = vmul.f32 %v1455, %v1331
        %v1457 = vmul.f32 %v1456, %v1455
        %v1458 = vmul.f32 0.5, %v1457
        %v1459 = vsub.f32 1.5, %v1458
        %v1460 = vmul.f32 %v1455, %v1459
        %vm1461 = vweird.f32 %v1331
        %vm1462 = vweird.f32 %v1455
        %vm1463 = vmor %vm1461, %vm1462
        %v1464 = vsel %vm1463, %v1455, %v1460
        %v1465 = vrsqrt.pop %v1332
        %v1466 = vmul.f32 %v1465, %v1332
        %v1467 = vmul.f32 %v1466, %v1465
        %v1468 = vmul.f32 0.5, %v1467
        %v1469 = vsub.f32 1.5, %v1468
        %v1470 = vmul.f32 %v1465, %v1469
        %vm1471 = vweird.f32 %v1332
        %vm1472 = vweird.f32 %v1465
        %vm1473 = vmor %vm1471, %vm1472
        %v1474 = vsel %vm1473, %v1465, %v1470
        %v1475 = vrsqrt.pop %v1333
        %v1476 = vmul.f32 %v1475, %v1333
        %v1477 = vmul.f32 %v1476, %v1475
        %v1478 = vmul.f32 0.5, %v1477
        %v1479 = vsub.f32 1.5, %v1478
        %v1480 = vmul.f32 %v1475, %v1479
        %vm1481 = vweird.f32 %v1333
        %vm1482 = vweird.f32 %v1475
        %vm1483 = vmor %vm1481, %vm1482
        %v1484 = vsel %vm1483, %v1475, %v1480
        %v1485 = vrsqrt.pop %v1334
        %v1486 = vmul.f32 %v1485, %v1334
        %v1487 = vmul.f32 %v1486, %v1485
        %v1488 = vmul.f32 0.5, %v1487
        %v1489 = vsub.f32 1.5, %v1488
        %v1490 = vmul.f32 %v1485, %v1489
        %vm1491 = vweird.f32 %v1334
        %vm1492 = vweird.f32 %v1485
        %vm1493 = vmor %vm1491, %vm1492
        %v1494 = vsel %vm1493, %v1485, %v1490
        %v1495 = vmul.f32 %v1303, %v1344
        %v1496 = vmul.f32 %v1304, %v1354
        %v1497 = vmul.f32 %v1305, %v1364
        %v1498 = vmul.f32 %v1306, %v1374
        %v1499 = vmul.f32 %v1307, %v1384
        %v1500 = vmul.f32 %v1308, %v1394
        %v1501 = vmul.f32 %v1309, %v1404
        %v1502 = vmul.f32 %v1310, %v1414
        %v1503 = vmul.f32 %v1311, %v1424
        %v1504 = vmul.f32 %v1312, %v1434
        %v1505 = vmul.f32 %v1313, %v1444
        %v1506 = vmul.f32 %v1314, %v1454
        %v1507 = vmul.f32 %v1315, %v1464
        %v1508 = vmul.f32 %v1316, %v1474
        %v1509 = vmul.f32 %v1317, %v1484
        %v1510 = vmul.f32 %v1318, %v1494
        %v1512 = vperm.slane %v1109, 0
        %v1514 = vmul.f32 %v1495, %v1512
        %v1515 = vmul.f32 %v1496, %v1512
        %v1516 = vmul.f32 %v1497, %v1512
        %v1517 = vmul.f32 %v1498, %v1512
        %v1518 = vmul.f32 %v1499, %v1512
        %v1519 = vmul.f32 %v1500, %v1512
        %v1520 = vmul.f32 %v1501, %v1512
        %v1521 = vmul.f32 %v1502, %v1512
        %v1522 = vmul.f32 %v1503, %v1512
        %v1523 = vmul.f32 %v1504, %v1512
        %v1524 = vmul.f32 %v1505, %v1512
        %v1525 = vmul.f32 %v1506, %v1512
        %v1526 = vmul.f32 %v1507, %v1512
        %v1527 = vmul.f32 %v1508, %v1512
        %v1528 = vmul.f32 %v1509, %v1512
        %v1529 = vmul.f32 %v1510, %v1512
        %v1531 = vperm.slane %v1110, 0
        %v1533 = vadd.f32 %v1514, %v1531
        %v1534 = vadd.f32 %v1515, %v1531
        %v1535 = vadd.f32 %v1516, %v1531
        %v1536 = vadd.f32 %v1517, %v1531
        %v1537 = vadd.f32 %v1518, %v1531
        %v1538 = vadd.f32 %v1519, %v1531
        %v1539 = vadd.f32 %v1520, %v1531
        %v1540 = vadd.f32 %v1521, %v1531
        %v1541 = vadd.f32 %v1522, %v1531
        %v1542 = vadd.f32 %v1523, %v1531
        %v1543 = vadd.f32 %v1524, %v1531
        %v1544 = vadd.f32 %v1525, %v1531
        %v1545 = vadd.f32 %v1526, %v1531
        %v1546 = vadd.f32 %v1527, %v1531
        %v1547 = vadd.f32 %v1528, %v1531
        %v1548 = vadd.f32 %v1529, %v1531
        %v1549 = vmax.f32 %v1533, 0.0
        %v1550 = vmax.f32 %v1534, 0.0
        %v1551 = vmax.f32 %v1535, 0.0
        %v1552 = vmax.f32 %v1536, 0.0
        %v1553 = vmax.f32 %v1537, 0.0
        %v1554 = vmax.f32 %v1538, 0.0
        %v1555 = vmax.f32 %v1539, 0.0
        %v1556 = vmax.f32 %v1540, 0.0
        %v1557 = vmax.f32 %v1541, 0.0
        %v1558 = vmax.f32 %v1542, 0.0
        %v1559 = vmax.f32 %v1543, 0.0
        %v1560 = vmax.f32 %v1544, 0.0
        %v1561 = vmax.f32 %v1545, 0.0
        %v1562 = vmax.f32 %v1546, 0.0
        %v1563 = vmax.f32 %v1547, 0.0
        %v1564 = vmax.f32 %v1548, 0.0
        %v1565 = vld [vmem:[%s9] sm:$0xff]
        %v1566 = vld [vmem:[%s9 + $0x8] sm:$0xff]
        %v1567 = vld [vmem:[%s9 + $0x10] sm:$0xff]
        %v1568 = vld [vmem:[%s9 + $0x18] sm:$0xff]
        %v1569 = vld [vmem:[%s10] sm:$0x1]
        %v1571 = vperm.slane %v1569, 0
        %v1574 = vsel %vm526, %v1549, 0
        %v1577 = vsel %vm526, %v1550, 0
        %v1580 = vsel %vm526, %v1551, 0
        %v1583 = vsel %vm526, %v1552, 0
        %v1586 = vsel %vm526, %v1553, 0
        %v1589 = vsel %vm526, %v1554, 0
        %v1592 = vsel %vm526, %v1555, 0
        %v1595 = vsel %vm526, %v1556, 0
        %v1598 = vsel %vm526, %v1557, 0
        %v1601 = vsel %vm526, %v1558, 0
        %v1604 = vsel %vm526, %v1559, 0
        %v1607 = vsel %vm526, %v1560, 0
        %v1610 = vsel %vm526, %v1561, 0
        %v1613 = vsel %vm526, %v1562, 0
        %v1616 = vsel %vm526, %v1563, 0
        %v1619 = vsel %vm526, %v1564, 0
        %1621 = vmatpush.msra.mxu0 0.0
        %1622 = vmatpush.msra.mxu0 0.0
        %1623 = vmatpush.msra.mxu0 0.0
        %1624 = vmatpush.msra.mxu0 0.0
        %1625 = vmatpush.msra.mxu0 0.0
        %1626 = vmatpush.msra.mxu0 0.0
        %1627 = vmatpush.msra.mxu0 0.0
        %1628 = vmatpush.msra.mxu0 0.0
        %1629 = vmatpush.msra.mxu0 0.0
        %1630 = vmatpush.msra.mxu0 0.0
        %1631 = vmatpush.msra.mxu0 0.0
        %1632 = vmatpush.msra.mxu0 0.0
        %1633 = vmatpush.msra.mxu0 %v1568
        %1634 = vmatpush.msra.mxu0 %v1567
        %1635 = vmatpush.msra.mxu0 %v1566
        %1636 = vmatpush.msra.mxu0 %v1565
        %1637 = vmatmul.f32.gmra.mxu0 %v1574
        %v1638 = vpop.f32.mrf.mxu0
        %v1639 = vadd.f32 %v1571, %v1638
        %1640 = vmatmul.f32.gmra.mxu0 %v1577
        %v1641 = vpop.f32.mrf.mxu0
        %v1642 = vadd.f32 %v1571, %v1641
        %1643 = vmatmul.f32.gmra.mxu0 %v1580
        %v1644 = vpop.f32.mrf.mxu0
        %v1645 = vadd.f32 %v1571, %v1644
        %1646 = vmatmul.f32.gmra.mxu0 %v1583
        %v1647 = vpop.f32.mrf.mxu0
        %v1648 = vadd.f32 %v1571, %v1647
        %1649 = vmatmul.f32.gmra.mxu0 %v1586
        %v1650 = vpop.f32.mrf.mxu0
        %v1651 = vadd.f32 %v1571, %v1650
        %1652 = vmatmul.f32.gmra.mxu0 %v1589
        %v1653 = vpop.f32.mrf.mxu0
        %v1654 = vadd.f32 %v1571, %v1653
        %1655 = vmatmul.f32.gmra.mxu0 %v1592
        %v1656 = vpop.f32.mrf.mxu0
        %v1657 = vadd.f32 %v1571, %v1656
        %1658 = vmatmul.f32.gmra.mxu0 %v1595
        %v1659 = vpop.f32.mrf.mxu0
        %v1660 = vadd.f32 %v1571, %v1659
        %1661 = vmatmul.f32.gmra.mxu0 %v1598
        %v1662 = vpop.f32.mrf.mxu0
        %v1663 = vadd.f32 %v1571, %v1662
        %1664 = vmatmul.f32.gmra.mxu0 %v1601
        %v1665 = vpop.f32.mrf.mxu0
        %v1666 = vadd.f32 %v1571, %v1665
        %1667 = vmatmul.f32.gmra.mxu0 %v1604
        %v1668 = vpop.f32.mrf.mxu0
        %v1669 = vadd.f32 %v1571, %v1668
        %1670 = vmatmul.f32.gmra.mxu0 %v1607
        %v1671 = vpop.f32.mrf.mxu0
        %v1672 = vadd.f32 %v1571, %v1671
        %1673 = vmatmul.f32.gmra.mxu0 %v1610
        %v1674 = vpop.f32.mrf.mxu0
        %v1675 = vadd.f32 %v1571, %v1674
        %1676 = vmatmul.f32.gmra.mxu0 %v1613
        %v1677 = vpop.f32.mrf.mxu0
        %v1678 = vadd.f32 %v1571, %v1677
        %1679 = vmatmul.f32.gmra.mxu0 %v1616
        %v1680 = vpop.f32.mrf.mxu0
        %v1681 = vadd.f32 %v1571, %v1680
        %1682 = vmatmul.f32.gmra.mxu0 %v1619
        %v1683 = vpop.f32.mrf.mxu0
        %v1684 = vadd.f32 %v1571, %v1683
        %1685 = vdwg.mxu0
        %1686 = vst [vmem:[%s380] sm:$0xff] %v1639
        %1687 = vst [vmem:[%s380 + $0x8] sm:$0xff] %v1642
        %1688 = vst [vmem:[%s380 + $0x10] sm:$0xff] %v1645
        %1689 = vst [vmem:[%s380 + $0x18] sm:$0xff] %v1648
        %1690 = vst [vmem:[%s380 + $0x20] sm:$0xff] %v1651
        %1691 = vst [vmem:[%s380 + $0x28] sm:$0xff] %v1654
        %1692 = vst [vmem:[%s380 + $0x30] sm:$0xff] %v1657
        %1693 = vst [vmem:[%s380 + $0x38] sm:$0xff] %v1660
        %1694 = vst [vmem:[%s380 + $0x40] sm:$0xff] %v1663
        %1695 = vst [vmem:[%s380 + $0x48] sm:$0xff] %v1666
        %1696 = vst [vmem:[%s380 + $0x50] sm:$0xff] %v1669
        %1697 = vst [vmem:[%s380 + $0x58] sm:$0xff] %v1672
        %1698 = vst [vmem:[%s380 + $0x60] sm:$0xff] %v1675
        %1699 = vst [vmem:[%s380 + $0x68] sm:$0xff] %v1678
        %1700 = vst [vmem:[%s380 + $0x70] sm:$0xff] %v1681
        %1701 = vst [vmem:[%s380 + $0x78] sm:$0xff] %v1684
        %s1702 = sand.u32 %s269, 1
        %s1703 = scalar_lea.sflag [#allocation3], %s1702
        %s1704 = sand.u32 %s269, 1
        %s1705 = smul.addr %s1704, 128
        %s1706 = scalar_lea.vmem [#allocation2], %s1705
        // Predicated region
        $region65: #{tpu_custom_call.1} parent=63 // pred_check
          %p1707 = pneg %p279
        $region66: #{tpu_custom_call.1} parent=63 // pred_check_branch
          %1709 = sbr.rel (%p1707) target = $region68
        $region67: #{tpu_custom_call.1} parent=63 // pred_region
          %s1710 = smul.u32 16, %s25
          %1712 = vsyncadd %s1703, 0
          %s1713 = smul.addr %s1710, 8
          %s1714 = scalar_lea.hbm %s11, %s1713
          %s1715 = sshll.u32 %s1706, 4
          %s1716 = int_to_ptr.vmem [resolvable:$true] %s1715
          %s1717 = sshll.u32 %s1714, 4
          %s1718 = int_to_ptr.hbm [resolvable:$true] %s1717
          %1723 = dma.vmem_to_hbm [thread:$0]  %s1716, 2048, %s1718, %s1703, 128, 128, 8
        $region68: #{tpu_custom_call.1} parent=63 // pred_fallthru
          _
      $region64: #{tpu_custom_call.1} parent=5 // pred_fallthru
        _
      %p1724 = scmp.le.s32.totalorder 2, %s20
      // Predicated region
      $region69: #{tpu_custom_call.1} parent=5 // pred_check
        %p1725 = pneg %p1724
      $region70: #{tpu_custom_call.1} parent=5 // pred_check_branch
        %1727 = sbr.rel (%p1725) target = $region72
      $region71: #{tpu_custom_call.1} parent=5 // pred_region
        %s1728 = ssub.s32 %s20, 2
        // Predicated region
        $region73: #{tpu_custom_call.1} parent=71 // pred_check
          %p1729 = pneg %p285
        $region74: #{tpu_custom_call.1} parent=71 // pred_check_branch
          %1731 = sbr.rel (%p1729) target = $region76
        $region75: #{tpu_custom_call.1} parent=71 // pred_region
          %s1732 = sand.u32 %s270, 1
          %s1733 = scalar_lea.sflag [#allocation3], %s1732
          %s1734 = sand.u32 %s270, 1
          %s1735 = smul.addr %s1734, 128
          %s1736 = scalar_lea.vmem [#allocation2], %s1735
          %1738 = dma.done %s1733, 2048
        $region76: #{tpu_custom_call.1} parent=71 // pred_fallthru
          _
      $region72: #{tpu_custom_call.1} parent=5 // pred_fallthru
        _
    $region6: #{tpu_custom_call.1} parent=1 // loop_footer
      %s24 = sadd.s32 1, %s20
    $region7: #{tpu_custom_call.1} parent=1 // loop_footer_branch
      %19 = sbr.rel target = $region3
    $region8: #{tpu_custom_call.1} parent=1 // loop_exit
      _
    %1739 = vsyncpa [#allocation3], 1
    %s1740 = scalar_lea.sflag [#allocation3], 1
    %1741 = vsyncpa %s1740, 1

</llo_original>
